<compile_context>
chip_gen: v6e
topology: v6e:2x2x1
jax: 0.10.0
libtpu: 0.0.40
codegen_flags: <defaults>
</compile_context>

<pallas_src>
import functools

import jax
import jax.numpy as jnp
import numpy as np
from jax import lax
from jax.experimental import pallas as pl
from jax.experimental.pallas import tpu as pltpu


def _round_up(x, m):
    return ((x + m - 1) // m) * m


def _orthogonal(key, shape, gain):
    """Deterministic orthogonal init (QR), matching nn.init.orthogonal_ semantics."""
    rows, cols = shape
    n = max(rows, cols)
    a = jax.random.normal(key, (n, n), dtype=jnp.float32)
    q, r = jnp.linalg.qr(a)
    q = q * jnp.sign(jnp.diag(r))[None, :]  # sign fix like PyTorch
    return gain * q[:rows, :cols]


def _layernorm(v, gamma, beta, eps):
    # Two-pass mean / variance (same form as nn.LayerNorm; no cancellation).
    mean = jnp.mean(v, axis=-1, keepdims=True)
    centered = v - mean
    var = jnp.mean(centered * centered, axis=-1, keepdims=True)
    return centered * lax.rsqrt(var + eps) * gamma + beta


# --------------------------------------------------------------------------- #
# Fused kernel: the whole FCBase forward for one batch tile.
# Ref order: x, [in_gamma, in_beta], then per layer: w, b, [gamma, beta], out.
# --------------------------------------------------------------------------- #
def _fcbase_kernel(*refs, input_ln, layer_flags, eps):
    idx = 0
    h = refs[idx][...].astype(jnp.float32)
    idx += 1
    if input_ln:
        g = refs[idx][...]
        b = refs[idx + 1][...]
        idx += 2
        h = _layernorm(h, g, b, eps)
    for has_ln, has_relu in layer_flags:
        w_ref = refs[idx]
        b_ref = refs[idx + 1]
        idx += 2
        w = w_ref[...]
        # Weights are stored in their compute dtype (f32 or bf16); accumulate f32.
        y = jnp.dot(h.astype(w.dtype), w, preferred_element_type=jnp.float32)
        y = y + b_ref[...]
        if has_ln:
            g = refs[idx][...]
            bt = refs[idx + 1][...]
            idx += 2
            y = _layernorm(y, g, bt, eps)
        if has_relu:
            y = jnp.maximum(y, 0.0)
        h = y
    o_ref = refs[idx]
    o_ref[...] = h.astype(o_ref.dtype)


# --------------------------------------------------------------------------- #
# Parameters
# --------------------------------------------------------------------------- #
def init_fcbase_params(key, input_dim, output_dim, hidden_dims, layernorm):
    assert len(hidden_dims) > 0, "Provide valid hidden layer configuration"
    layer_cfg = [(input_dim, hidden_dims[0], bool(layernorm), True)]
    for h in hidden_dims[1:]:
        layer_cfg.append((h, h, bool(layernorm), True))
    layer_cfg.append((hidden_dims[-1], output_dim, False, False))

    params = {"layers": [], "layer_cfg": tuple(layer_cfg)}
    if layernorm:
        params["in_ln"] = (jnp.ones((input_dim,), jnp.float32),
                           jnp.zeros((input_dim,), jnp.float32))
    keys = jax.random.split(key, len(layer_cfg))
    for kk, (din, dout, has_ln, _) in zip(keys, layer_cfg):
        w = _orthogonal(kk, (dout, din), gain=float(np.sqrt(2.0))).T  # (K, N)
        b = jnp.zeros((dout,), jnp.float32)
        g = jnp.ones((dout,), jnp.float32) if has_ln else None
        bt = jnp.zeros((dout,), jnp.float32) if has_ln else None
        params["layers"].append((w, b, g, bt))
    return params


def prepare_fcbase_params(params, compute_dtype=jnp.float32):
    """One-time prep: pad final layer to a lane-dense width, reshape vectors to
    (1, N), cast weights to the matmul compute dtype. Done once, not per call."""
    layer_cfg = params["layer_cfg"]
    in_ln = params.get("in_ln")
    input_ln = in_ln is not None

    flat = []
    if input_ln:
        g, b = in_ln
        flat += [g.reshape(1, -1).astype(jnp.float32),
                 b.reshape(1, -1).astype(jnp.float32)]

    n_layers = len(params["layers"])
    out_dim = layer_cfg[-1][1]
    padded_out = _round_up(out_dim, 128)

    layer_flags, layer_dims = [], []
    for li, ((w, b, g, bt), (din, dout, has_ln, has_relu)) in enumerate(
            zip(params["layers"], layer_cfg)):
        if li == n_layers - 1 and padded_out != dout:
            w = jnp.pad(w, ((0, 0), (0, padded_out - dout)))   # zero columns
            b = jnp.pad(b, ((0, padded_out - dout),))
            dout = padded_out
        flat += [jnp.asarray(w, compute_dtype),
                 b.reshape(1, -1).astype(jnp.float32)]
        if has_ln:
            flat += [g.reshape(1, -1).astype(jnp.float32),
                     bt.reshape(1, -1).astype(jnp.float32)]
        layer_flags.append((bool(has_ln), bool(has_relu)))
        layer_dims.append((din, dout))

    return dict(flat_params=tuple(flat),
                layer_flags=tuple(layer_flags),
                layer_dims=tuple(layer_dims),
                input_ln=input_ln,
                input_dim=layer_cfg[0][0],
                output_dim=out_dim,
                padded_output_dim=padded_out)


# --------------------------------------------------------------------------- #
# Forward: single pallas_call over batch tiles.
# --------------------------------------------------------------------------- #
def fcbase_forward(packed, x, *, block_b=256, eps=1e-5):
    B, K0 = x.shape
    assert K0 == packed["input_dim"]
    out_dim = packed["output_dim"]
    n_pad = packed["padded_output_dim"]
    flat = packed["flat_params"]

    param_bytes = sum(int(p.size) * p.dtype.itemsize for p in flat)
    if param_bytes > 40 * 1024 * 1024:
        # TODO(synk): per-layer streamed fallback for very large parameter sets.
        raise NotImplementedError("FCBase parameters too large to keep VMEM-resident")

    # Batch tiling: multiple of 8 sublanes; prefer >= 2 tiles so the "parallel"
    # axis pipelines x/out DMAs and can shard across both TCs on v7x.
    b8 = _round_up(B, 8)
    tb = min(_round_up(max(block_b, 8), 8), b8)
    if b8 >= 16 and b8 // tb < 2:
        tb = _round_up(max(b8 // 2, 8), 8)
    B_pad = _round_up(B, tb)
    if B_pad != B:
        x = jnp.pad(x, ((0, B_pad - B), (0, 0)))   # small: only x, only the tail
    nb = B_pad // tb

    in_specs = [pl.BlockSpec((tb, K0), lambda i: (i, 0))]
    # Grid-invariant full-array blocks: DMA'd once (block index never changes).
    in_specs += [pl.BlockSpec(p.shape, lambda i: (0, 0)) for p in flat]

    kernel = functools.partial(
        _fcbase_kernel, input_ln=packed["input_ln"],
        layer_flags=packed["layer_flags"], eps=eps)

    # VMEM budget: params (x2 buffers) + x/out tiles (x2) + live activations.
    widths = [K0] + [d[1] for d in packed["layer_dims"]]
    x_blk = tb * K0 * x.dtype.itemsize
    out_blk = tb * n_pad * 4
    act_bytes = 2 * tb * max(widths) * 4
    est = 2 * (param_bytes + x_blk + out_blk) + act_bytes
    vmem_limit = int(min(max(4 * est, 32 * 1024 * 1024), 100 * 1024 * 1024))

    n_ln = int(packed["input_ln"]) + sum(int(f[0]) for f in packed["layer_flags"])
    cost = pl.CostEstimate(
        flops=2 * B_pad * sum(din * dout for din, dout in packed["layer_dims"]),
        transcendentals=B_pad * n_ln,
        bytes_accessed=(B_pad * K0 * x.dtype.itemsize
                        + param_bytes
                        + B_pad * n_pad * 4),
    )

    out = pl.pallas_call(
        kernel,
        out_shape=jax.ShapeDtypeStruct((B_pad, n_pad), jnp.float32),
        grid_spec=pltpu.PrefetchScalarGridSpec(
            num_scalar_prefetch=0,
            grid=(nb,),
            in_specs=in_specs,
            out_specs=pl.BlockSpec((tb, n_pad), lambda i: (i, 0)),
        ),
        compiler_params=pltpu.CompilerParams(
            dimension_semantics=("parallel",),
            vmem_limit_bytes=vmem_limit),
        cost_estimate=cost,
    )(x, *flat)

    return out[:B, :out_dim]


# --------------------------------------------------------------------------- #
# Pure-JAX reference matching the PyTorch FCBase forward.
# --------------------------------------------------------------------------- #
def fcbase_ref(params, x, eps=1e-5):
    def ln(v, g, b):
        m = v.mean(-1, keepdims=True)
        var = ((v - m) ** 2).mean(-1, keepdims=True)
        return (v - m) / jnp.sqrt(var + eps) * g + b

    h = x
    in_ln = params.get("in_ln")
    if in_ln is not None:
        h = ln(h, *in_ln)
    for (w, b, g, bt), (_, _, has_ln, has_relu) in zip(
            params["layers"], params["layer_cfg"]):
        h = h @ w + b
        if has_ln:
            h = ln(h, g, bt)
        if has_relu:
            h = jnp.maximum(h, 0.0)
    return h


if __name__ == "__main__":
    key = jax.random.PRNGKey(0)
    k_params, k_x = jax.random.split(key)

    batch, input_dim, output_dim = 60, 24, 8
    hidden_dims = [256, 256]   # lane-dense hidden widths

    params = init_fcbase_params(k_params, input_dim, output_dim, hidden_dims,
                                layernorm=True)
    x = jax.random.normal(k_x, (batch, input_dim), dtype=jnp.float32)

    # f32 path (exact check): batch is split into 2 tiles of 32 (exercises the
    # padded B tail, pipelining and the megacore-shardable "parallel" axis).
    packed_f32 = prepare_fcbase_params(params, compute_dtype=jnp.float32)
    out = fcbase_forward(packed_f32, x, block_b=256)
    jax.block_until_ready(out)
    assert out.shape == (batch, output_dim)

    ref = fcbase_ref(params, x)
    np.testing.assert_allclose(np.asarray(out), np.asarray(ref),
                               atol=1e-4, rtol=1e-4)

    # bf16-weight throughput path (f32 accumulation / LN / ReLU): sanity only.
    packed_bf16 = prepare_fcbase_params(params, compute_dtype=jnp.bfloat16)
    out_bf16 = fcbase_forward(packed_bf16, x, block_b=256)
    jax.block_until_ready(out_bf16)
    assert out_bf16.shape == (batch, output_dim)
    assert bool(jnp.all(jnp.isfinite(out_bf16)))

    print("KERNEL_OK")
</pallas_src>

<mosaic_0001>
module attributes {stable_mosaic.version = 11 : i64} {
  func.func @_fcbase_kernel(%arg0: i32, %arg1: memref<32x24xf32, #tpu.memory_space<vmem>>, %arg2: memref<1x24xf32, #tpu.memory_space<vmem>>, %arg3: memref<1x24xf32, #tpu.memory_space<vmem>>, %arg4: memref<24x256xf32, #tpu.memory_space<vmem>>, %arg5: memref<1x256xf32, #tpu.memory_space<vmem>>, %arg6: memref<1x256xf32, #tpu.memory_space<vmem>>, %arg7: memref<1x256xf32, #tpu.memory_space<vmem>>, %arg8: memref<256x256xf32, #tpu.memory_space<vmem>>, %arg9: memref<1x256xf32, #tpu.memory_space<vmem>>, %arg10: memref<1x256xf32, #tpu.memory_space<vmem>>, %arg11: memref<1x256xf32, #tpu.memory_space<vmem>>, %arg12: memref<256x128xf32, #tpu.memory_space<vmem>>, %arg13: memref<1x128xf32, #tpu.memory_space<vmem>>, %arg14: memref<32x128xf32, #tpu.memory_space<vmem>>) attributes {dimension_semantics = [#tpu.dimension_semantics<parallel>], iteration_bounds = array<i64: 2>, scalar_prefetch = 0 : i64, scratch_operands = 0 : i64, tpu.core_type = #tpu.core_type<tc>, window_params = [{transform_indices = @transform_0, window_bounds = array<i64: 32, 24>}, {pipeline_mode = #tpu.pipeline_mode<synchronous>, transform_indices = @transform_1, window_bounds = array<i64: 1, 24>}, {pipeline_mode = #tpu.pipeline_mode<synchronous>, transform_indices = @transform_2, window_bounds = array<i64: 1, 24>}, {pipeline_mode = #tpu.pipeline_mode<synchronous>, transform_indices = @transform_3, window_bounds = array<i64: 24, 256>}, {pipeline_mode = #tpu.pipeline_mode<synchronous>, transform_indices = @transform_4, window_bounds = array<i64: 1, 256>}, {pipeline_mode = #tpu.pipeline_mode<synchronous>, transform_indices = @transform_5, window_bounds = array<i64: 1, 256>}, {pipeline_mode = #tpu.pipeline_mode<synchronous>, transform_indices = @transform_6, window_bounds = array<i64: 1, 256>}, {pipeline_mode = #tpu.pipeline_mode<synchronous>, transform_indices = @transform_7, window_bounds = array<i64: 256, 256>}, {pipeline_mode = #tpu.pipeline_mode<synchronous>, transform_indices = @transform_8, window_bounds = array<i64: 1, 256>}, {pipeline_mode = #tpu.pipeline_mode<synchronous>, transform_indices = @transform_9, window_bounds = array<i64: 1, 256>}, {pipeline_mode = #tpu.pipeline_mode<synchronous>, transform_indices = @transform_10, window_bounds = array<i64: 1, 256>}, {pipeline_mode = #tpu.pipeline_mode<synchronous>, transform_indices = @transform_11, window_bounds = array<i64: 256, 128>}, {pipeline_mode = #tpu.pipeline_mode<synchronous>, transform_indices = @transform_12, window_bounds = array<i64: 1, 128>}, {transform_indices = @transform_13, window_bounds = array<i64: 32, 128>}]} {
    %c0 = arith.constant 0 : index
    %c0_0 = arith.constant 0 : index
    %0 = vector.load %arg1[%c0, %c0_0] : memref<32x24xf32, #tpu.memory_space<vmem>>, vector<32x24xf32>
    %c0_1 = arith.constant 0 : index
    %c0_2 = arith.constant 0 : index
    %1 = vector.load %arg2[%c0_1, %c0_2] : memref<1x24xf32, #tpu.memory_space<vmem>>, vector<1x24xf32>
    %c0_3 = arith.constant 0 : index
    %c0_4 = arith.constant 0 : index
    %2 = vector.load %arg3[%c0_3, %c0_4] : memref<1x24xf32, #tpu.memory_space<vmem>>, vector<1x24xf32>
    %cst = arith.constant dense<0.000000e+00> : vector<32xf32>
    %3 = vector.multi_reduction <add>, %0, %cst [1] : vector<32x24xf32> to vector<32xf32>
    %4 = vector.shape_cast %3 : vector<32xf32> to vector<32x1xf32>
    %cst_5 = arith.constant 2.400000e+01 : f32
    %5 = vector.broadcast %cst_5 : f32 to vector<32x1xf32>
    %6 = arith.divf %4, %5 : vector<32x1xf32>
    %7 = vector.broadcast %6 : vector<32x1xf32> to vector<32x24xf32>
    %8 = arith.subf %0, %7 : vector<32x24xf32>
    %9 = arith.mulf %8, %8 : vector<32x24xf32>
    %cst_6 = arith.constant dense<0.000000e+00> : vector<32xf32>
    %10 = vector.multi_reduction <add>, %9, %cst_6 [1] : vector<32x24xf32> to vector<32xf32>
    %11 = vector.shape_cast %10 : vector<32xf32> to vector<32x1xf32>
    %cst_7 = arith.constant 2.400000e+01 : f32
    %12 = vector.broadcast %cst_7 : f32 to vector<32x1xf32>
    %13 = arith.divf %11, %12 : vector<32x1xf32>
    %cst_8 = arith.constant 9.99999974E-6 : f32
    %14 = vector.broadcast %cst_8 : f32 to vector<32x1xf32>
    %15 = arith.addf %13, %14 : vector<32x1xf32>
    %16 = math.rsqrt %15 : vector<32x1xf32>
    %17 = vector.broadcast %16 : vector<32x1xf32> to vector<32x24xf32>
    %18 = arith.mulf %8, %17 : vector<32x24xf32>
    %19 = vector.broadcast %1 : vector<1x24xf32> to vector<32x24xf32>
    %20 = arith.mulf %18, %19 : vector<32x24xf32>
    %21 = vector.broadcast %2 : vector<1x24xf32> to vector<32x24xf32>
    %22 = arith.addf %20, %21 : vector<32x24xf32>
    %c0_9 = arith.constant 0 : index
    %c0_10 = arith.constant 0 : index
    %23 = vector.load %arg4[%c0_9, %c0_10] : memref<24x256xf32, #tpu.memory_space<vmem>>, vector<24x256xf32>
    %cst_11 = arith.constant dense<0.000000e+00> : vector<32x256xf32>
    %24 = tpu.matmul %22, %23, %cst_11 {dimension_numbers = #tpu.dot_dimension_numbers<[1], [0], [0], [1], [0, 0, 1, 1], [], []>} : vector<32x24xf32>, vector<24x256xf32>, vector<32x256xf32> -> vector<32x256xf32>
    %c0_12 = arith.constant 0 : index
    %c0_13 = arith.constant 0 : index
    %25 = vector.load %arg5[%c0_12, %c0_13] : memref<1x256xf32, #tpu.memory_space<vmem>>, vector<1x256xf32>
    %26 = vector.broadcast %25 : vector<1x256xf32> to vector<32x256xf32>
    %27 = arith.addf %24, %26 : vector<32x256xf32>
    %c0_14 = arith.constant 0 : index
    %c0_15 = arith.constant 0 : index
    %28 = vector.load %arg6[%c0_14, %c0_15] : memref<1x256xf32, #tpu.memory_space<vmem>>, vector<1x256xf32>
    %c0_16 = arith.constant 0 : index
    %c0_17 = arith.constant 0 : index
    %29 = vector.load %arg7[%c0_16, %c0_17] : memref<1x256xf32, #tpu.memory_space<vmem>>, vector<1x256xf32>
    %cst_18 = arith.constant dense<0.000000e+00> : vector<32xf32>
    %30 = vector.multi_reduction <add>, %27, %cst_18 [1] : vector<32x256xf32> to vector<32xf32>
    %31 = vector.shape_cast %30 : vector<32xf32> to vector<32x1xf32>
    %cst_19 = arith.constant 2.560000e+02 : f32
    %32 = vector.broadcast %cst_19 : f32 to vector<32x1xf32>
    %33 = arith.divf %31, %32 : vector<32x1xf32>
    %34 = vector.broadcast %33 : vector<32x1xf32> to vector<32x256xf32>
    %35 = arith.subf %27, %34 : vector<32x256xf32>
    %36 = arith.mulf %35, %35 : vector<32x256xf32>
    %cst_20 = arith.constant dense<0.000000e+00> : vector<32xf32>
    %37 = vector.multi_reduction <add>, %36, %cst_20 [1] : vector<32x256xf32> to vector<32xf32>
    %38 = vector.shape_cast %37 : vector<32xf32> to vector<32x1xf32>
    %cst_21 = arith.constant 2.560000e+02 : f32
    %39 = vector.broadcast %cst_21 : f32 to vector<32x1xf32>
    %40 = arith.divf %38, %39 : vector<32x1xf32>
    %cst_22 = arith.constant 9.99999974E-6 : f32
    %41 = vector.broadcast %cst_22 : f32 to vector<32x1xf32>
    %42 = arith.addf %40, %41 : vector<32x1xf32>
    %43 = math.rsqrt %42 : vector<32x1xf32>
    %44 = vector.broadcast %43 : vector<32x1xf32> to vector<32x256xf32>
    %45 = arith.mulf %35, %44 : vector<32x256xf32>
    %46 = vector.broadcast %28 : vector<1x256xf32> to vector<32x256xf32>
    %47 = arith.mulf %45, %46 : vector<32x256xf32>
    %48 = vector.broadcast %29 : vector<1x256xf32> to vector<32x256xf32>
    %49 = arith.addf %47, %48 : vector<32x256xf32>
    %cst_23 = arith.constant 0.000000e+00 : f32
    %50 = vector.broadcast %cst_23 : f32 to vector<32x256xf32>
    %51 = arith.maximumf %49, %50 : vector<32x256xf32>
    %c0_24 = arith.constant 0 : index
    %c0_25 = arith.constant 0 : index
    %52 = vector.load %arg8[%c0_24, %c0_25] : memref<256x256xf32, #tpu.memory_space<vmem>>, vector<256x256xf32>
    %cst_26 = arith.constant dense<0.000000e+00> : vector<32x256xf32>
    %53 = tpu.matmul %51, %52, %cst_26 {dimension_numbers = #tpu.dot_dimension_numbers<[1], [0], [0], [1], [0, 0, 1, 1], [], []>} : vector<32x256xf32>, vector<256x256xf32>, vector<32x256xf32> -> vector<32x256xf32>
    %c0_27 = arith.constant 0 : index
    %c0_28 = arith.constant 0 : index
    %54 = vector.load %arg9[%c0_27, %c0_28] : memref<1x256xf32, #tpu.memory_space<vmem>>, vector<1x256xf32>
    %55 = vector.broadcast %54 : vector<1x256xf32> to vector<32x256xf32>
    %56 = arith.addf %53, %55 : vector<32x256xf32>
    %c0_29 = arith.constant 0 : index
    %c0_30 = arith.constant 0 : index
    %57 = vector.load %arg10[%c0_29, %c0_30] : memref<1x256xf32, #tpu.memory_space<vmem>>, vector<1x256xf32>
    %c0_31 = arith.constant 0 : index
    %c0_32 = arith.constant 0 : index
    %58 = vector.load %arg11[%c0_31, %c0_32] : memref<1x256xf32, #tpu.memory_space<vmem>>, vector<1x256xf32>
    %cst_33 = arith.constant dense<0.000000e+00> : vector<32xf32>
    %59 = vector.multi_reduction <add>, %56, %cst_33 [1] : vector<32x256xf32> to vector<32xf32>
    %60 = vector.shape_cast %59 : vector<32xf32> to vector<32x1xf32>
    %cst_34 = arith.constant 2.560000e+02 : f32
    %61 = vector.broadcast %cst_34 : f32 to vector<32x1xf32>
    %62 = arith.divf %60, %61 : vector<32x1xf32>
    %63 = vector.broadcast %62 : vector<32x1xf32> to vector<32x256xf32>
    %64 = arith.subf %56, %63 : vector<32x256xf32>
    %65 = arith.mulf %64, %64 : vector<32x256xf32>
    %cst_35 = arith.constant dense<0.000000e+00> : vector<32xf32>
    %66 = vector.multi_reduction <add>, %65, %cst_35 [1] : vector<32x256xf32> to vector<32xf32>
    %67 = vector.shape_cast %66 : vector<32xf32> to vector<32x1xf32>
    %cst_36 = arith.constant 2.560000e+02 : f32
    %68 = vector.broadcast %cst_36 : f32 to vector<32x1xf32>
    %69 = arith.divf %67, %68 : vector<32x1xf32>
    %cst_37 = arith.constant 9.99999974E-6 : f32
    %70 = vector.broadcast %cst_37 : f32 to vector<32x1xf32>
    %71 = arith.addf %69, %70 : vector<32x1xf32>
    %72 = math.rsqrt %71 : vector<32x1xf32>
    %73 = vector.broadcast %72 : vector<32x1xf32> to vector<32x256xf32>
    %74 = arith.mulf %64, %73 : vector<32x256xf32>
    %75 = vector.broadcast %57 : vector<1x256xf32> to vector<32x256xf32>
    %76 = arith.mulf %74, %75 : vector<32x256xf32>
    %77 = vector.broadcast %58 : vector<1x256xf32> to vector<32x256xf32>
    %78 = arith.addf %76, %77 : vector<32x256xf32>
    %cst_38 = arith.constant 0.000000e+00 : f32
    %79 = vector.broadcast %cst_38 : f32 to vector<32x256xf32>
    %80 = arith.maximumf %78, %79 : vector<32x256xf32>
    %c0_39 = arith.constant 0 : index
    %c0_40 = arith.constant 0 : index
    %81 = vector.load %arg12[%c0_39, %c0_40] : memref<256x128xf32, #tpu.memory_space<vmem>>, vector<256x128xf32>
    %cst_41 = arith.constant dense<0.000000e+00> : vector<32x128xf32>
    %82 = tpu.matmul %80, %81, %cst_41 {dimension_numbers = #tpu.dot_dimension_numbers<[1], [0], [0], [1], [0, 0, 1, 1], [], []>} : vector<32x256xf32>, vector<256x128xf32>, vector<32x128xf32> -> vector<32x128xf32>
    %c0_42 = arith.constant 0 : index
    %c0_43 = arith.constant 0 : index
    %83 = vector.load %arg13[%c0_42, %c0_43] : memref<1x128xf32, #tpu.memory_space<vmem>>, vector<1x128xf32>
    %84 = vector.broadcast %83 : vector<1x128xf32> to vector<32x128xf32>
    %85 = arith.addf %82, %84 : vector<32x128xf32>
    %c0_44 = arith.constant 0 : index
    %c0_45 = arith.constant 0 : index
    %86 = vector.load %arg14[%c0_44, %c0_45] : memref<32x128xf32, #tpu.memory_space<vmem>>, vector<32x128xf32>
    tpu.vector_store %arg14[%c0_44, %c0_45], %85 {strides = array<i32>} : memref<32x128xf32, #tpu.memory_space<vmem>>, vector<32x128xf32>,
    return
  }
  func.func @transform_0(%arg0: i32) -> (i32, i32) {
    %c0_i32 = arith.constant 0 : i32
    %c0_i32_0 = arith.constant 0 : i32
    return %arg0, %c0_i32 : i32, i32
  }
  func.func @transform_1(%arg0: i32) -> (i32, i32) {
    %c0_i32 = arith.constant 0 : i32
    %c0_i32_0 = arith.constant 0 : i32
    %c0_i32_1 = arith.constant 0 : i32
    return %c0_i32, %c0_i32_0 : i32, i32
  }
  func.func @transform_2(%arg0: i32) -> (i32, i32) {
    %c0_i32 = arith.constant 0 : i32
    %c0_i32_0 = arith.constant 0 : i32
    %c0_i32_1 = arith.constant 0 : i32
    return %c0_i32, %c0_i32_0 : i32, i32
  }
  func.func @transform_3(%arg0: i32) -> (i32, i32) {
    %c0_i32 = arith.constant 0 : i32
    %c0_i32_0 = arith.constant 0 : i32
    %c0_i32_1 = arith.constant 0 : i32
    return %c0_i32, %c0_i32_0 : i32, i32
  }
  func.func @transform_4(%arg0: i32) -> (i32, i32) {
    %c0_i32 = arith.constant 0 : i32
    %c0_i32_0 = arith.constant 0 : i32
    %c0_i32_1 = arith.constant 0 : i32
    return %c0_i32, %c0_i32_0 : i32, i32
  }
  func.func @transform_5(%arg0: i32) -> (i32, i32) {
    %c0_i32 = arith.constant 0 : i32
    %c0_i32_0 = arith.constant 0 : i32
    %c0_i32_1 = arith.constant 0 : i32
    return %c0_i32, %c0_i32_0 : i32, i32
  }
  func.func @transform_6(%arg0: i32) -> (i32, i32) {
    %c0_i32 = arith.constant 0 : i32
    %c0_i32_0 = arith.constant 0 : i32
    %c0_i32_1 = arith.constant 0 : i32
    return %c0_i32, %c0_i32_0 : i32, i32
  }
  func.func @transform_7(%arg0: i32) -> (i32, i32) {
    %c0_i32 = arith.constant 0 : i32
    %c0_i32_0 = arith.constant 0 : i32
    %c0_i32_1 = arith.constant 0 : i32
    return %c0_i32, %c0_i32_0 : i32, i32
  }
  func.func @transform_8(%arg0: i32) -> (i32, i32) {
    %c0_i32 = arith.constant 0 : i32
    %c0_i32_0 = arith.constant 0 : i32
    %c0_i32_1 = arith.constant 0 : i32
    return %c0_i32, %c0_i32_0 : i32, i32
  }
  func.func @transform_9(%arg0: i32) -> (i32, i32) {
    %c0_i32 = arith.constant 0 : i32
    %c0_i32_0 = arith.constant 0 : i32
    %c0_i32_1 = arith.constant 0 : i32
    return %c0_i32, %c0_i32_0 : i32, i32
  }
  func.func @transform_10(%arg0: i32) -> (i32, i32) {
    %c0_i32 = arith.constant 0 : i32
    %c0_i32_0 = arith.constant 0 : i32
    %c0_i32_1 = arith.constant 0 : i32
    return %c0_i32, %c0_i32_0 : i32, i32
  }
  func.func @transform_11(%arg0: i32) -> (i32, i32) {
    %c0_i32 = arith.constant 0 : i32
    %c0_i32_0 = arith.constant 0 : i32
    %c0_i32_1 = arith.constant 0 : i32
    return %c0_i32, %c0_i32_0 : i32, i32
  }
  func.func @transform_12(%arg0: i32) -> (i32, i32) {
    %c0_i32 = arith.constant 0 : i32
    %c0_i32_0 = arith.constant 0 : i32
    %c0_i32_1 = arith.constant 0 : i32
    return %c0_i32, %c0_i32_0 : i32, i32
  }
  func.func @transform_13(%arg0: i32) -> (i32, i32) {
    %c0_i32 = arith.constant 0 : i32
    %c0_i32_0 = arith.constant 0 : i32
    return %arg0, %c0_i32 : i32, i32
  }
}

</mosaic_0001>

<llo_original>
// kernel: tpu_custom_call.1
$region0: #{tpu_custom_call.1}
  #allocation0 [shape = 'u32[]', space=smem, size = 0x4, offset = 0x4, fixed_abs, tag = 'smem constant byte address 0x4 - core index']
  #allocation1 [shape = 'u32[144,128]{1,0:T(1,128)}', space=vmem, size = 0x12000, scoped, tag = 'internal scratch']
  %s0 = inlined_call_operand.vmem [shape: f32[64,24], index: 0, kind: input, shape index: {}]
  %s1 = inlined_call_operand.vmem [shape: f32[1,24], index: 1, kind: input, shape index: {}]
  %s2 = inlined_call_operand.vmem [shape: f32[1,24], index: 2, kind: input, shape index: {}]
  %s3 = inlined_call_operand.vmem [shape: f32[24,256], index: 3, kind: input, shape index: {}]
  %s4 = inlined_call_operand.vmem [shape: f32[1,256], index: 4, kind: input, shape index: {}]
  %s5 = inlined_call_operand.vmem [shape: f32[1,256], index: 5, kind: input, shape index: {}]
  %s6 = inlined_call_operand.vmem [shape: f32[1,256], index: 6, kind: input, shape index: {}]
  %s7 = inlined_call_operand.hbm [shape: f32[256,256], index: 7, kind: input, shape index: {}]
  %s8 = inlined_call_operand.vmem [shape: f32[1,256], index: 8, kind: input, shape index: {}]
  %s9 = inlined_call_operand.vmem [shape: f32[1,256], index: 9, kind: input, shape index: {}]
  %s10 = inlined_call_operand.vmem [shape: f32[1,256], index: 10, kind: input, shape index: {}]
  %s11 = inlined_call_operand.hbm [shape: f32[256,128], index: 11, kind: input, shape index: {}]
  %s12 = inlined_call_operand.vmem [shape: f32[1,128], index: 12, kind: input, shape index: {}]
  %s13 = inlined_call_operand.hbm [shape: f32[64,128], index: 13, kind: output, shape index: {}]
  %s14 = sld [smem:[#allocation0]]
  $region93: #{tpu_custom_call.1} parent=0
    _
  %s16 = ssub.s32 1, %s14
  %s17 = scalar_select 0, %s16, %s14
  $region1: #{tpu_custom_call.1} parent=0
    #allocation2 [shape = 'u8[262144]{0}', space=vmem, size = 0x40000, scoped, tag = 'input window, operand 7, single buffered']
    #allocation3 [shape = 's32[2]{0}', space=sflag, size = 0x8, scoped, tag = 'scoped memory for tpu_custom_call.1']
    #allocation4 [shape = 's32[2]{0}', space=sflag, size = 0x8, scoped, tag = 'scoped memory for tpu_custom_call.1']
    #allocation5 [shape = 'u8[131072]{0}', space=vmem, size = 0x20000, scoped, tag = 'input window, operand 11, single buffered']
    #allocation6 [shape = 's32[1]{0}', space=sflag, size = 0x4, scoped, tag = 'scoped memory for tpu_custom_call.1']
    #allocation7 [shape = 'u8[32768]{0}', space=vmem, size = 0x8000, scoped, tag = 'output window, operand 0']
    %18 = vsyncpa [#allocation3], 0
    %19 = vsyncpa [#allocation6], 0
    %20 = vsyncpa [#allocation4], 0
    %s21 = scalar_lea.sflag [#allocation4], 1
    %22 = vsyncpa %s21, 0
    loop: start=0, step=1, limit=4
    $region2: #{tpu_custom_call.1} parent=1 // loop_pre_header
      _
    $region3: #{tpu_custom_call.1} parent=1 // loop_header
      %s24 = sphi 0, %s28
      %p25 = scmp.ge.s32.totalorder %s24, 4
      %s34 = sphi 0, %s36
      %s37 = sphi 0, %s34
      %s38 = sphi 0, %s37
      %s54 = sphi 0, %s38
      %s58 = sphi 0, %s58
      %s60 = sphi 0, %s58
      %s61 = sphi 0, %s60
      %s75 = sphi 0, %s61
      %s79 = sphi 0, %s79
      %s81 = sphi 0, %s79
      %s82 = sphi 0, %s81
      %s96 = sphi 0, %s82
      %s100 = sphi 0, %s100
      %s102 = sphi 0, %s100
      %s103 = sphi 0, %s102
      %s117 = sphi 0, %s103
      %s121 = sphi 0, %s121
      %s123 = sphi 0, %s121
      %s124 = sphi 0, %s123
      %s138 = sphi 0, %s124
      %s142 = sphi 0, %s142
      %s144 = sphi 0, %s142
      %s145 = sphi 0, %s144
      %s159 = sphi 0, %s145
      %s163 = sphi 0, %s163
      %s165 = sphi 0, %s163
      %s166 = sphi 0, %s165
      %s180 = sphi 0, %s166
      %s184 = sphi 0, %s184
      %s186 = sphi 0, %s184
      %s187 = sphi 0, %s186
      %s201 = sphi 0, %s187
      %s205 = sphi 0, %s205
      %s207 = sphi 0, %s205
      %s208 = sphi 0, %s207
      %s222 = sphi 0, %s208
      %s226 = sphi 0, %s226
      %s228 = sphi 0, %s226
      %s229 = sphi 0, %s228
      %s243 = sphi 0, %s229
      %s247 = sphi 0, %s247
      %s249 = sphi 0, %s247
      %s250 = sphi 0, %s249
      %s264 = sphi 0, %s250
      %s268 = sphi 0, %s268
      %s270 = sphi 0, %s268
      %s271 = sphi 0, %s270
      %s285 = sphi 0, %s271
      %s289 = sphi 0, %s289
      %s291 = sphi 0, %s289
      %s292 = sphi 0, %s291
      %s306 = sphi 0, %s292
      %s312 = sphi 0, %s314
      %s315 = sphi 0, %s312
      %s316 = sphi 0, %s315
      %s332 = sphi 0, %s316
    $region4: #{tpu_custom_call.1} parent=1 // loop_header_branch
      %27 = sbr.rel (%p25) target = $region8
    $region5: #{tpu_custom_call.1} parent=1 // loop_body
      %s29 = ssub.s32 %s24, 1
      %s30 = ssub.s32 %s24, 2
      %s31 = sadd.s32 %s24, 1
      %s32 = ssub.s32 %s24, %s31
      %p33 = scmp.eq.s32.totalorder %s32, 0
      %s35 = sadd.s32 %s34, 1
      %s36 = scalar_select %p33, %s34, %s35
      %p39 = pneg %p33
      %p40 = scmp.eq.s32.totalorder %s24, 1
      %p41 = por %p39, %p40
      %p42 = scmp.ne.s32.totalorder %s34, %s37
      %p43 = scmp.eq.s32.totalorder %s24, 0
      %p44 = por %p42, %p43
      %p45 = scmp.ne.s32.totalorder %s34, %s37
      %p46 = scmp.eq.s32.totalorder %s29, 1
      %p47 = por %p45, %p46
      %p48 = scmp.ne.s32.totalorder %s37, %s38
      %p49 = scmp.eq.s32.totalorder %s29, 0
      %p50 = por %p48, %p49
      %p51 = scmp.ne.s32.totalorder %s37, %s38
      %p52 = scmp.eq.s32.totalorder %s30, 1
      %p53 = por %p51, %p52
      %p55 = scmp.ne.s32.totalorder %s38, %s54
      %p56 = scmp.eq.s32.totalorder %s30, 0
      %p57 = por %p55, %p56
      %s59 = sadd.s32 %s58, 1
      %p62 = scmp.eq.s32.totalorder %s24, 1
      %p63 = scmp.ne.s32.totalorder %s58, %s60
      %p64 = scmp.eq.s32.totalorder %s24, 0
      %p65 = por %p63, %p64
      %p66 = scmp.ne.s32.totalorder %s58, %s60
      %p67 = scmp.eq.s32.totalorder %s29, 1
      %p68 = por %p66, %p67
      %p69 = scmp.ne.s32.totalorder %s60, %s61
      %p70 = scmp.eq.s32.totalorder %s29, 0
      %p71 = por %p69, %p70
      %p72 = scmp.ne.s32.totalorder %s60, %s61
      %p73 = scmp.eq.s32.totalorder %s30, 1
      %p74 = por %p72, %p73
      %p76 = scmp.ne.s32.totalorder %s61, %s75
      %p77 = scmp.eq.s32.totalorder %s30, 0
      %p78 = por %p76, %p77
      %s80 = sadd.s32 %s79, 1
      %p83 = scmp.eq.s32.totalorder %s24, 1
      %p84 = scmp.ne.s32.totalorder %s79, %s81
      %p85 = scmp.eq.s32.totalorder %s24, 0
      %p86 = por %p84, %p85
      %p87 = scmp.ne.s32.totalorder %s79, %s81
      %p88 = scmp.eq.s32.totalorder %s29, 1
      %p89 = por %p87, %p88
      %p90 = scmp.ne.s32.totalorder %s81, %s82
      %p91 = scmp.eq.s32.totalorder %s29, 0
      %p92 = por %p90, %p91
      %p93 = scmp.ne.s32.totalorder %s81, %s82
      %p94 = scmp.eq.s32.totalorder %s30, 1
      %p95 = por %p93, %p94
      %p97 = scmp.ne.s32.totalorder %s82, %s96
      %p98 = scmp.eq.s32.totalorder %s30, 0
      %p99 = por %p97, %p98
      %s101 = sadd.s32 %s100, 1
      %p104 = scmp.eq.s32.totalorder %s24, 1
      %p105 = scmp.ne.s32.totalorder %s100, %s102
      %p106 = scmp.eq.s32.totalorder %s24, 0
      %p107 = por %p105, %p106
      %p108 = scmp.ne.s32.totalorder %s100, %s102
      %p109 = scmp.eq.s32.totalorder %s29, 1
      %p110 = por %p108, %p109
      %p111 = scmp.ne.s32.totalorder %s102, %s103
      %p112 = scmp.eq.s32.totalorder %s29, 0
      %p113 = por %p111, %p112
      %p114 = scmp.ne.s32.totalorder %s102, %s103
      %p115 = scmp.eq.s32.totalorder %s30, 1
      %p116 = por %p114, %p115
      %p118 = scmp.ne.s32.totalorder %s103, %s117
      %p119 = scmp.eq.s32.totalorder %s30, 0
      %p120 = por %p118, %p119
      %s122 = sadd.s32 %s121, 1
      %p125 = scmp.eq.s32.totalorder %s24, 1
      %p126 = scmp.ne.s32.totalorder %s121, %s123
      %p127 = scmp.eq.s32.totalorder %s24, 0
      %p128 = por %p126, %p127
      %p129 = scmp.ne.s32.totalorder %s121, %s123
      %p130 = scmp.eq.s32.totalorder %s29, 1
      %p131 = por %p129, %p130
      %p132 = scmp.ne.s32.totalorder %s123, %s124
      %p133 = scmp.eq.s32.totalorder %s29, 0
      %p134 = por %p132, %p133
      %p135 = scmp.ne.s32.totalorder %s123, %s124
      %p136 = scmp.eq.s32.totalorder %s30, 1
      %p137 = por %p135, %p136
      %p139 = scmp.ne.s32.totalorder %s124, %s138
      %p140 = scmp.eq.s32.totalorder %s30, 0
      %p141 = por %p139, %p140
      %s143 = sadd.s32 %s142, 1
      %p146 = scmp.eq.s32.totalorder %s24, 1
      %p147 = scmp.ne.s32.totalorder %s142, %s144
      %p148 = scmp.eq.s32.totalorder %s24, 0
      %p149 = por %p147, %p148
      %p150 = scmp.ne.s32.totalorder %s142, %s144
      %p151 = scmp.eq.s32.totalorder %s29, 1
      %p152 = por %p150, %p151
      %p153 = scmp.ne.s32.totalorder %s144, %s145
      %p154 = scmp.eq.s32.totalorder %s29, 0
      %p155 = por %p153, %p154
      %p156 = scmp.ne.s32.totalorder %s144, %s145
      %p157 = scmp.eq.s32.totalorder %s30, 1
      %p158 = por %p156, %p157
      %p160 = scmp.ne.s32.totalorder %s145, %s159
      %p161 = scmp.eq.s32.totalorder %s30, 0
      %p162 = por %p160, %p161
      %s164 = sadd.s32 %s163, 1
      %p167 = scmp.eq.s32.totalorder %s24, 1
      %p168 = scmp.ne.s32.totalorder %s163, %s165
      %p169 = scmp.eq.s32.totalorder %s24, 0
      %p170 = por %p168, %p169
      %p171 = scmp.ne.s32.totalorder %s163, %s165
      %p172 = scmp.eq.s32.totalorder %s29, 1
      %p173 = por %p171, %p172
      %p174 = scmp.ne.s32.totalorder %s165, %s166
      %p175 = scmp.eq.s32.totalorder %s29, 0
      %p176 = por %p174, %p175
      %p177 = scmp.ne.s32.totalorder %s165, %s166
      %p178 = scmp.eq.s32.totalorder %s30, 1
      %p179 = por %p177, %p178
      %p181 = scmp.ne.s32.totalorder %s166, %s180
      %p182 = scmp.eq.s32.totalorder %s30, 0
      %p183 = por %p181, %p182
      %s185 = sadd.s32 %s184, 1
      %p188 = scmp.eq.s32.totalorder %s24, 1
      %p189 = scmp.ne.s32.totalorder %s184, %s186
      %p190 = scmp.eq.s32.totalorder %s24, 0
      %p191 = por %p189, %p190
      %p192 = scmp.ne.s32.totalorder %s184, %s186
      %p193 = scmp.eq.s32.totalorder %s29, 1
      %p194 = por %p192, %p193
      %p195 = scmp.ne.s32.totalorder %s186, %s187
      %p196 = scmp.eq.s32.totalorder %s29, 0
      %p197 = por %p195, %p196
      %p198 = scmp.ne.s32.totalorder %s186, %s187
      %p199 = scmp.eq.s32.totalorder %s30, 1
      %p200 = por %p198, %p199
      %p202 = scmp.ne.s32.totalorder %s187, %s201
      %p203 = scmp.eq.s32.totalorder %s30, 0
      %p204 = por %p202, %p203
      %s206 = sadd.s32 %s205, 1
      %p209 = scmp.eq.s32.totalorder %s24, 1
      %p210 = scmp.ne.s32.totalorder %s205, %s207
      %p211 = scmp.eq.s32.totalorder %s24, 0
      %p212 = por %p210, %p211
      %p213 = scmp.ne.s32.totalorder %s205, %s207
      %p214 = scmp.eq.s32.totalorder %s29, 1
      %p215 = por %p213, %p214
      %p216 = scmp.ne.s32.totalorder %s207, %s208
      %p217 = scmp.eq.s32.totalorder %s29, 0
      %p218 = por %p216, %p217
      %p219 = scmp.ne.s32.totalorder %s207, %s208
      %p220 = scmp.eq.s32.totalorder %s30, 1
      %p221 = por %p219, %p220
      %p223 = scmp.ne.s32.totalorder %s208, %s222
      %p224 = scmp.eq.s32.totalorder %s30, 0
      %p225 = por %p223, %p224
      %s227 = sadd.s32 %s226, 1
      %p230 = scmp.eq.s32.totalorder %s24, 1
      %p231 = scmp.ne.s32.totalorder %s226, %s228
      %p232 = scmp.eq.s32.totalorder %s24, 0
      %p233 = por %p231, %p232
      %p234 = scmp.ne.s32.totalorder %s226, %s228
      %p235 = scmp.eq.s32.totalorder %s29, 1
      %p236 = por %p234, %p235
      %p237 = scmp.ne.s32.totalorder %s228, %s229
      %p238 = scmp.eq.s32.totalorder %s29, 0
      %p239 = por %p237, %p238
      %p240 = scmp.ne.s32.totalorder %s228, %s229
      %p241 = scmp.eq.s32.totalorder %s30, 1
      %p242 = por %p240, %p241
      %p244 = scmp.ne.s32.totalorder %s229, %s243
      %p245 = scmp.eq.s32.totalorder %s30, 0
      %p246 = por %p244, %p245
      %s248 = sadd.s32 %s247, 1
      %p251 = scmp.eq.s32.totalorder %s24, 1
      %p252 = scmp.ne.s32.totalorder %s247, %s249
      %p253 = scmp.eq.s32.totalorder %s24, 0
      %p254 = por %p252, %p253
      %p255 = scmp.ne.s32.totalorder %s247, %s249
      %p256 = scmp.eq.s32.totalorder %s29, 1
      %p257 = por %p255, %p256
      %p258 = scmp.ne.s32.totalorder %s249, %s250
      %p259 = scmp.eq.s32.totalorder %s29, 0
      %p260 = por %p258, %p259
      %p261 = scmp.ne.s32.totalorder %s249, %s250
      %p262 = scmp.eq.s32.totalorder %s30, 1
      %p263 = por %p261, %p262
      %p265 = scmp.ne.s32.totalorder %s250, %s264
      %p266 = scmp.eq.s32.totalorder %s30, 0
      %p267 = por %p265, %p266
      %s269 = sadd.s32 %s268, 1
      %p272 = scmp.eq.s32.totalorder %s24, 1
      %p273 = scmp.ne.s32.totalorder %s268, %s270
      %p274 = scmp.eq.s32.totalorder %s24, 0
      %p275 = por %p273, %p274
      %p276 = scmp.ne.s32.totalorder %s268, %s270
      %p277 = scmp.eq.s32.totalorder %s29, 1
      %p278 = por %p276, %p277
      %p279 = scmp.ne.s32.totalorder %s270, %s271
      %p280 = scmp.eq.s32.totalorder %s29, 0
      %p281 = por %p279, %p280
      %p282 = scmp.ne.s32.totalorder %s270, %s271
      %p283 = scmp.eq.s32.totalorder %s30, 1
      %p284 = por %p282, %p283
      %p286 = scmp.ne.s32.totalorder %s271, %s285
      %p287 = scmp.eq.s32.totalorder %s30, 0
      %p288 = por %p286, %p287
      %s290 = sadd.s32 %s289, 1
      %p293 = scmp.eq.s32.totalorder %s24, 1
      %p294 = scmp.ne.s32.totalorder %s289, %s291
      %p295 = scmp.eq.s32.totalorder %s24, 0
      %p296 = por %p294, %p295
      %p297 = scmp.ne.s32.totalorder %s289, %s291
      %p298 = scmp.eq.s32.totalorder %s29, 1
      %p299 = por %p297, %p298
      %p300 = scmp.ne.s32.totalorder %s291, %s292
      %p301 = scmp.eq.s32.totalorder %s29, 0
      %p302 = por %p300, %p301
      %p303 = scmp.ne.s32.totalorder %s291, %s292
      %p304 = scmp.eq.s32.totalorder %s30, 1
      %p305 = por %p303, %p304
      %p307 = scmp.ne.s32.totalorder %s292, %s306
      %p308 = scmp.eq.s32.totalorder %s30, 0
      %p309 = por %p307, %p308
      %s310 = ssub.s32 %s24, %s31
      %p311 = scmp.eq.s32.totalorder %s310, 0
      %s313 = sadd.s32 %s312, 1
      %s314 = scalar_select %p311, %s312, %s313
      %p317 = pneg %p311
      %p318 = scmp.eq.s32.totalorder %s24, 1
      %p319 = por %p317, %p318
      %p320 = scmp.ne.s32.totalorder %s312, %s315
      %p321 = scmp.eq.s32.totalorder %s24, 0
      %p322 = por %p320, %p321
      %p323 = scmp.ne.s32.totalorder %s312, %s315
      %p324 = scmp.eq.s32.totalorder %s29, 1
      %p325 = por %p323, %p324
      %p326 = scmp.ne.s32.totalorder %s315, %s316
      %p327 = scmp.eq.s32.totalorder %s29, 0
      %p328 = por %p326, %p327
      %p329 = scmp.ne.s32.totalorder %s315, %s316
      %p330 = scmp.eq.s32.totalorder %s30, 1
      %p331 = por %p329, %p330
      %p333 = scmp.ne.s32.totalorder %s316, %s332
      %p334 = scmp.eq.s32.totalorder %s30, 0
      %p335 = por %p333, %p334
      %p336 = scmp.le.s32.totalorder 1, %s24
      %p337 = scmp.lt.s32.totalorder %s24, 3
      %p338 = pnand %p336, %p337
      %p339 = pneg %p338
      // Predicated region
      $region9: #{tpu_custom_call.1} parent=5 // pred_check
        _
      $region10: #{tpu_custom_call.1} parent=5 // pred_check_branch
        %341 = sbr.rel (%p338) target = $region12
      $region11: #{tpu_custom_call.1} parent=5 // pred_region
        %s342 = ssub.s32 %s24, 1
        // Predicated region
        $region13: #{tpu_custom_call.1} parent=11 // pred_check
          %p343 = pneg %p71
        $region14: #{tpu_custom_call.1} parent=11 // pred_check_branch
          %345 = sbr.rel (%p343) target = $region16
        $region15: #{tpu_custom_call.1} parent=11 // pred_region
          _
        $region16: #{tpu_custom_call.1} parent=11 // pred_fallthru
          _
        // Predicated region
        $region17: #{tpu_custom_call.1} parent=11 // pred_check
          %p346 = pneg %p92
        $region18: #{tpu_custom_call.1} parent=11 // pred_check_branch
          %348 = sbr.rel (%p346) target = $region20
        $region19: #{tpu_custom_call.1} parent=11 // pred_region
          _
        $region20: #{tpu_custom_call.1} parent=11 // pred_fallthru
          _
        // Predicated region
        $region21: #{tpu_custom_call.1} parent=11 // pred_check
          %p349 = pneg %p113
        $region22: #{tpu_custom_call.1} parent=11 // pred_check_branch
          %351 = sbr.rel (%p349) target = $region24
        $region23: #{tpu_custom_call.1} parent=11 // pred_region
          _
        $region24: #{tpu_custom_call.1} parent=11 // pred_fallthru
          _
        // Predicated region
        $region25: #{tpu_custom_call.1} parent=11 // pred_check
          %p352 = pneg %p134
        $region26: #{tpu_custom_call.1} parent=11 // pred_check_branch
          %354 = sbr.rel (%p352) target = $region28
        $region27: #{tpu_custom_call.1} parent=11 // pred_region
          _
        $region28: #{tpu_custom_call.1} parent=11 // pred_fallthru
          _
        // Predicated region
        $region29: #{tpu_custom_call.1} parent=11 // pred_check
          %p355 = pneg %p155
        $region30: #{tpu_custom_call.1} parent=11 // pred_check_branch
          %357 = sbr.rel (%p355) target = $region32
        $region31: #{tpu_custom_call.1} parent=11 // pred_region
          _
        $region32: #{tpu_custom_call.1} parent=11 // pred_fallthru
          _
        // Predicated region
        $region33: #{tpu_custom_call.1} parent=11 // pred_check
          %p358 = pneg %p176
        $region34: #{tpu_custom_call.1} parent=11 // pred_check_branch
          %360 = sbr.rel (%p358) target = $region36
        $region35: #{tpu_custom_call.1} parent=11 // pred_region
          _
        $region36: #{tpu_custom_call.1} parent=11 // pred_fallthru
          _
        // Predicated region
        $region37: #{tpu_custom_call.1} parent=11 // pred_check
          %p361 = pneg %p197
        $region38: #{tpu_custom_call.1} parent=11 // pred_check_branch
          %363 = sbr.rel (%p361) target = $region40
        $region39: #{tpu_custom_call.1} parent=11 // pred_region
          %s365 = ssub.s32 8192, 8192
          %366 = vsyncadd [#allocation3], %s365
          %s367 = sshll.u32 [#allocation2], 4
          %s368 = int_to_ptr.vmem [resolvable:$true] %s367
          %373 = dma.hbm_to_vmem [thread:$0]  %s7, 8192, %s368, [#allocation3], 256, 256, 16
        $region40: #{tpu_custom_call.1} parent=11 // pred_fallthru
          _
        // Predicated region
        $region41: #{tpu_custom_call.1} parent=11 // pred_check
          %p374 = pneg %p218
        $region42: #{tpu_custom_call.1} parent=11 // pred_check_branch
          %376 = sbr.rel (%p374) target = $region44
        $region43: #{tpu_custom_call.1} parent=11 // pred_region
          _
        $region44: #{tpu_custom_call.1} parent=11 // pred_fallthru
          _
        // Predicated region
        $region45: #{tpu_custom_call.1} parent=11 // pred_check
          %p377 = pneg %p239
        $region46: #{tpu_custom_call.1} parent=11 // pred_check_branch
          %379 = sbr.rel (%p377) target = $region48
        $region47: #{tpu_custom_call.1} parent=11 // pred_region
          _
        $region48: #{tpu_custom_call.1} parent=11 // pred_fallthru
          _
        // Predicated region
        $region49: #{tpu_custom_call.1} parent=11 // pred_check
          %p380 = pneg %p260
        $region50: #{tpu_custom_call.1} parent=11 // pred_check_branch
          %382 = sbr.rel (%p380) target = $region52
        $region51: #{tpu_custom_call.1} parent=11 // pred_region
          _
        $region52: #{tpu_custom_call.1} parent=11 // pred_fallthru
          _
        // Predicated region
        $region53: #{tpu_custom_call.1} parent=11 // pred_check
          %p383 = pneg %p281
        $region54: #{tpu_custom_call.1} parent=11 // pred_check_branch
          %385 = sbr.rel (%p383) target = $region56
        $region55: #{tpu_custom_call.1} parent=11 // pred_region
          %s387 = ssub.s32 4096, 4096
          %388 = vsyncadd [#allocation6], %s387
          %s389 = sshll.u32 [#allocation5], 4
          %s390 = int_to_ptr.vmem [resolvable:$true] %s389
          %395 = dma.hbm_to_vmem [thread:$0]  %s11, 4096, %s390, [#allocation6], 128, 128, 8
        $region56: #{tpu_custom_call.1} parent=11 // pred_fallthru
          _
        // Predicated region
        $region57: #{tpu_custom_call.1} parent=11 // pred_check
          %p396 = pneg %p302
        $region58: #{tpu_custom_call.1} parent=11 // pred_check_branch
          %398 = sbr.rel (%p396) target = $region60
        $region59: #{tpu_custom_call.1} parent=11 // pred_region
          _
        $region60: #{tpu_custom_call.1} parent=11 // pred_fallthru
          _
      $region12: #{tpu_custom_call.1} parent=5 // pred_fallthru
        _
      %p399 = scmp.lt.s32.totalorder %s24, 2
      // Predicated region
      $region61: #{tpu_custom_call.1} parent=5 // pred_check
        %p400 = pneg %p399
      $region62: #{tpu_custom_call.1} parent=5 // pred_check_branch
        %402 = sbr.rel (%p400) target = $region64
      $region63: #{tpu_custom_call.1} parent=5 // pred_region
        // Predicated region
        $region65: #{tpu_custom_call.1} parent=63 // pred_check
          %p403 = pneg %p44
        $region66: #{tpu_custom_call.1} parent=63 // pred_check_branch
          %405 = sbr.rel (%p403) target = $region68
        $region67: #{tpu_custom_call.1} parent=63 // pred_region
          %s406 = smul.u32 4, %s24
          %p407 = scmp.lt.s32.totalorder %s406, 7
          %s408 = scalar_select %p407, %s406, 7
          %s409 = smul.addr %s408, 8
          %s410 = scalar_lea.vmem %s0, %s409
          %s411 = smul.u32 4, %s24
        $region68: #{tpu_custom_call.1} parent=63 // pred_fallthru
          _
      $region64: #{tpu_custom_call.1} parent=5 // pred_fallthru
        _
      %p412 = scmp.le.s32.totalorder 1, %s24
      %p413 = scmp.lt.s32.totalorder %s24, 3
      %p414 = pnand %p412, %p413
      %p415 = pneg %p414
      // Predicated region
      $region69: #{tpu_custom_call.1} parent=5 // pred_check
        _
      $region70: #{tpu_custom_call.1} parent=5 // pred_check_branch
        %417 = sbr.rel (%p414) target = $region72
      $region71: #{tpu_custom_call.1} parent=5 // pred_region
        %s418 = ssub.s32 %s24, 1
        // Predicated region
        $region73: #{tpu_custom_call.1} parent=71 // pred_check
          %p419 = pneg %p197
        $region74: #{tpu_custom_call.1} parent=71 // pred_check_branch
          %421 = sbr.rel (%p419) target = $region76
        $region75: #{tpu_custom_call.1} parent=71 // pred_region
          %422 = dma.done [#allocation3], 8192
        $region76: #{tpu_custom_call.1} parent=71 // pred_fallthru
          _
        // Predicated region
        $region77: #{tpu_custom_call.1} parent=71 // pred_check
          %p423 = pneg %p281
        $region78: #{tpu_custom_call.1} parent=71 // pred_check_branch
          %425 = sbr.rel (%p423) target = $region80
        $region79: #{tpu_custom_call.1} parent=71 // pred_region
          %426 = dma.done [#allocation6], 4096
        $region80: #{tpu_custom_call.1} parent=71 // pred_fallthru
          _
        %s427 = smul.u32 4, %s29
        %p428 = scmp.lt.s32.totalorder %s427, 7
        %s429 = scalar_select %p428, %s427, 7
        %s430 = smul.addr %s429, 8
        %s431 = scalar_lea.vmem %s0, %s430
        %p432 = pneg %p50
        %p433 = pneg %p47
        %p434 = pneg %p71
        %p435 = pneg %p68
        %p436 = pneg %p92
        %p437 = pneg %p89
        %p438 = pneg %p113
        %p439 = pneg %p110
        %p440 = pneg %p134
        %p441 = pneg %p131
        %p442 = pneg %p155
        %p443 = pneg %p152
        %p444 = pneg %p176
        %p445 = pneg %p173
        %p446 = pneg %p197
        %p447 = pneg %p194
        %p448 = pneg %p218
        %p449 = pneg %p215
        %p450 = pneg %p239
        %p451 = pneg %p236
        %p452 = pneg %p260
        %p453 = pneg %p257
        %p454 = pneg %p281
        %p455 = pneg %p278
        %p456 = pneg %p302
        %p457 = pneg %p299
        %p458 = pneg %p328
        %p459 = pneg %p325
        %s460 = sand.u32 %s315, 1
        %s461 = scalar_lea.sflag [#allocation4], %s460
        %s462 = sand.u32 %s315, 1
        %s463 = smul.addr %s462, 32
        %s464 = scalar_lea.vmem [#allocation7], %s463
        %s465 = smul.u32 4, %s29
        %p466 = scmp.lt.s32.totalorder %s465, 7
        %s467 = scalar_select %p466, %s465, 7
        %s468 = smul.addr %s467, 8
        %s469 = scalar_lea.vmem %s0, %s468
        %s470 = smul.u32 4, %s29
        %s471 = smul.u32 4, %s29
        %v472 = vld [vmem:[%s469] sm:$0xff]
        %v473 = vld [vmem:[%s469 + $0x8] sm:$0xff]
        %v474 = vld [vmem:[%s469 + $0x10] sm:$0xff]
        %v475 = vld [vmem:[%s469 + $0x18] sm:$0xff]
        %v476 = vld [vmem:[%s1] sm:$0x1]
        %v477 = vld [vmem:[%s2] sm:$0x1]
        %vm478 = vcmask 195584
        %v479 = vsel %vm478, %v472, 0.0
        %480 = vadd.xlane.f32.xlu0 %v479
        %v481 = vpop.xlane.xlu0 %480
        %v482 = vsel %vm478, %v473, 0.0
        %483 = vadd.xlane.f32.xlu0 %v482
        %v484 = vpop.xlane.xlu0 %483
        %v485 = vsel %vm478, %v474, 0.0
        %486 = vadd.xlane.f32.xlu0 %v485
        %v487 = vpop.xlane.xlu0 %486
        %v488 = vsel %vm478, %v475, 0.0
        %489 = vadd.xlane.f32.xlu0 %v488
        %v490 = vpop.xlane.xlu0 %489
        %v491 = vrcp.pop 24.0
        %v492 = vmul.f32 %v481, %v491
        %v493 = vmul.f32 %v484, %v491
        %v494 = vmul.f32 %v487, %v491
        %v495 = vmul.f32 %v490, %v491
        %v496 = vsub.f32 %v472, %v492
        %v497 = vsub.f32 %v473, %v493
        %v498 = vsub.f32 %v474, %v494
        %v499 = vsub.f32 %v475, %v495
        %v500 = vmul.f32 %v496, %v496
        %v501 = vmul.f32 %v497, %v497
        %v502 = vmul.f32 %v498, %v498
        %v503 = vmul.f32 %v499, %v499
        %v504 = vsel %vm478, %v500, 0.0
        %505 = vadd.xlane.f32.xlu0 %v504
        %v506 = vpop.xlane.xlu0 %505
        %v507 = vsel %vm478, %v501, 0.0
        %508 = vadd.xlane.f32.xlu0 %v507
        %v509 = vpop.xlane.xlu0 %508
        %v510 = vsel %vm478, %v502, 0.0
        %511 = vadd.xlane.f32.xlu0 %v510
        %v512 = vpop.xlane.xlu0 %511
        %v513 = vsel %vm478, %v503, 0.0
        %514 = vadd.xlane.f32.xlu0 %v513
        %v515 = vpop.xlane.xlu0 %514
        %v516 = vmul.f32 %v506, %v491
        %v517 = vmul.f32 %v509, %v491
        %v518 = vmul.f32 %v512, %v491
        %v519 = vmul.f32 %v515, %v491
        %v520 = vadd.f32 %v516, 1e-05
        %v521 = vadd.f32 %v517, 1e-05
        %v522 = vadd.f32 %v518, 1e-05
        %v523 = vadd.f32 %v519, 1e-05
        %v524 = vrsqrt.pop %v520
        %v525 = vrsqrt.pop %v521
        %v526 = vrsqrt.pop %v522
        %v527 = vrsqrt.pop %v523
        %v528 = vmul.f32 %v496, %v524
        %v529 = vmul.f32 %v497, %v525
        %v530 = vmul.f32 %v498, %v526
        %v531 = vmul.f32 %v499, %v527
        %v533 = vlaneseq
        %v534 = vshrl.u32 %v533, 7
        %v535 = vsub.s32 0, %v534
        %v536 = vrot.slane %v476, %v535
        %v538 = vmul.f32 %v528, %v536
        %v539 = vmul.f32 %v529, %v536
        %v540 = vmul.f32 %v530, %v536
        %v541 = vmul.f32 %v531, %v536
        %v543 = vlaneseq
        %v544 = vshrl.u32 %v543, 7
        %v545 = vsub.s32 0, %v544
        %v546 = vrot.slane %v477, %v545
        %v548 = vadd.f32 %v538, %v546
        %v549 = vadd.f32 %v539, %v546
        %v550 = vadd.f32 %v540, %v546
        %v551 = vadd.f32 %v541, %v546
        %v552 = vld [vmem:[%s3] sm:$0xff]
        %v553 = vld [vmem:[%s3 + $0x8] sm:$0xff]
        %v554 = vld [vmem:[%s3 + $0x10] sm:$0xff]
        %v555 = vld [vmem:[%s3 + $0x18] sm:$0xff]
        %v556 = vld [vmem:[%s3 + $0x20] sm:$0xff]
        %v557 = vld [vmem:[%s3 + $0x28] sm:$0xff]
        %v558 = vld [vmem:[%s4] sm:$0x3]
        %v560 = vlaneseq
        %v561 = vshrl.u32 %v560, 7
        %v562 = vsub.s32 0, %v561
        %v563 = vrot.slane %v558, %v562
        %v564 = vlaneseq
        %v565 = vshrl.u32 %v564, 7
        %v566 = vsub.s32 1, %v565
        %v567 = vrot.slane %v558, %v566
        %v571 = vsel %vm478, %v548, 0
        %v574 = vsel %vm478, %v549, 0
        %v577 = vsel %vm478, %v550, 0
        %v580 = vsel %vm478, %v551, 0
        %582 = vmatprep.subr.mxu0 0.0
        %583 = vmatpush1.msra.mxu0 0.0
        %584 = vmatprep.subr.mxu0 0.0
        %585 = vmatpush1.msra.mxu0 0.0
        %586 = vmatprep.subr.mxu0 0.0
        %587 = vmatpush1.msra.mxu0 0.0
        %588 = vmatprep.subr.mxu0 0.0
        %589 = vmatpush1.msra.mxu0 0.0
        %590 = vmatprep.subr.mxu0 0.0
        %591 = vmatpush1.msra.mxu0 0.0
        %592 = vmatprep.subr.mxu0 0.0
        %593 = vmatpush1.msra.mxu0 0.0
        %594 = vmatprep.subr.mxu0 0.0
        %595 = vmatpush1.msra.mxu0 0.0
        %596 = vmatprep.subr.mxu0 0.0
        %597 = vmatpush1.msra.mxu0 0.0
        %598 = vmatprep.subr.mxu0 0.0
        %599 = vmatpush1.msra.mxu0 0.0
        %600 = vmatprep.subr.mxu0 0.0
        %601 = vmatpush1.msra.mxu0 0.0
        %602 = vmatprep.subr.mxu0 0.0
        %603 = vmatpush1.msra.mxu0 0.0
        %604 = vmatprep.subr.mxu0 0.0
        %605 = vmatpush1.msra.mxu0 0.0
        %606 = vmatprep.subr.mxu0 0.0
        %607 = vmatpush1.msra.mxu0 0.0
        %608 = vmatprep.subr.mxu0 %v557
        %609 = vmatpush1.msra.mxu0 %v556
        %610 = vmatprep.subr.mxu0 %v555
        %611 = vmatpush1.msra.mxu0 %v554
        %612 = vmatprep.subr.mxu0 %v553
        %613 = vmatpush1.msra.mxu0 %v552
        %614 = vmatprep.subr.mxu0 0.0
        %615 = vmatpush2.msra.mxu0 0.0
        %616 = vmatprep.subr.mxu0 0.0
        %617 = vmatpush2.msra.mxu0 0.0
        %618 = vmatprep.subr.mxu0 0.0
        %619 = vmatpush2.msra.mxu0 0.0
        %620 = vmatprep.subr.mxu0 0.0
        %621 = vmatpush2.msra.mxu0 0.0
        %622 = vmatprep.subr.mxu0 0.0
        %623 = vmatpush2.msra.mxu0 0.0
        %624 = vmatprep.subr.mxu0 0.0
        %625 = vmatpush2.msra.mxu0 0.0
        %626 = vmatprep.subr.mxu0 0.0
        %627 = vmatpush2.msra.mxu0 0.0
        %628 = vmatprep.subr.mxu0 0.0
        %629 = vmatpush2.msra.mxu0 0.0
        %630 = vmatprep.subr.mxu0 0.0
        %631 = vmatpush2.msra.mxu0 0.0
        %632 = vmatprep.subr.mxu0 0.0
        %633 = vmatpush2.msra.mxu0 0.0
        %634 = vmatprep.subr.mxu0 0.0
        %635 = vmatpush2.msra.mxu0 0.0
        %636 = vmatprep.subr.mxu0 0.0
        %637 = vmatpush2.msra.mxu0 0.0
        %638 = vmatprep.subr.mxu0 0.0
        %639 = vmatpush2.msra.mxu0 0.0
        %640 = vmatprep.subr.mxu0 0.0
        %641 = vmatpush2.msra.mxu0 0.0
        %642 = vmatprep.subr.mxu0 0.0
        %643 = vmatpush2.msra.mxu0 0.0
        %644 = vmatprep.subr.mxu0 0.0
        %645 = vmatpush2.msra.mxu0 0.0
        %646 = vmatprep.mubr.f32.mxu0 0.0
        %647 = vmatmul.mubr.f32.gmra.mxu0 %v571
        %v648 = vpop.f32.mrf.mxu0
        %v649 = vadd.f32 %v563, %v648
        %v650 = vpop.f32.mrf.mxu0
        %v651 = vadd.f32 %v567, %v650
        %652 = vmatprep.mubr.f32.mxu0 0.0
        %653 = vmatmul.mubr.f32.gmra.mxu0 %v574
        %v654 = vpop.f32.mrf.mxu0
        %v655 = vadd.f32 %v563, %v654
        %v656 = vpop.f32.mrf.mxu0
        %v657 = vadd.f32 %v567, %v656
        %658 = vmatprep.mubr.f32.mxu0 0.0
        %659 = vmatmul.mubr.f32.gmra.mxu0 %v577
        %v660 = vpop.f32.mrf.mxu0
        %v661 = vadd.f32 %v563, %v660
        %v662 = vpop.f32.mrf.mxu0
        %v663 = vadd.f32 %v567, %v662
        %664 = vmatprep.mubr.f32.mxu0 0.0
        %665 = vmatmul.mubr.f32.gmra.mxu0 %v580
        %v666 = vpop.f32.mrf.mxu0
        %v667 = vadd.f32 %v563, %v666
        %v668 = vpop.f32.mrf.mxu0
        %v669 = vadd.f32 %v567, %v668
        %670 = vdwg.mxu0
        %v671 = vld [vmem:[%s5] sm:$0x3]
        %v672 = vld [vmem:[%s6] sm:$0x3]
        %v673 = vadd.f32 %v649, %v651
        %674 = vadd.xlane.f32.xlu0 %v673
        %v675 = vpop.xlane.xlu0 %674
        %v676 = vadd.f32 %v655, %v657
        %677 = vadd.xlane.f32.xlu0 %v676
        %v678 = vpop.xlane.xlu0 %677
        %v679 = vadd.f32 %v661, %v663
        %680 = vadd.xlane.f32.xlu0 %v679
        %v681 = vpop.xlane.xlu0 %680
        %v682 = vadd.f32 %v667, %v669
        %683 = vadd.xlane.f32.xlu0 %v682
        %v684 = vpop.xlane.xlu0 %683
        %v685 = vrcp.pop 256.0
        %v686 = vmul.f32 %v675, %v685
        %v687 = vmul.f32 %v678, %v685
        %v688 = vmul.f32 %v681, %v685
        %v689 = vmul.f32 %v684, %v685
        %v690 = vsub.f32 %v649, %v686
        %v691 = vsub.f32 %v651, %v686
        %v692 = vsub.f32 %v655, %v687
        %v693 = vsub.f32 %v657, %v687
        %v694 = vsub.f32 %v661, %v688
        %v695 = vsub.f32 %v663, %v688
        %v696 = vsub.f32 %v667, %v689
        %v697 = vsub.f32 %v669, %v689
        %v698 = vmul.f32 %v690, %v690
        %v699 = vmul.f32 %v691, %v691
        %v700 = vmul.f32 %v692, %v692
        %v701 = vmul.f32 %v693, %v693
        %v702 = vmul.f32 %v694, %v694
        %v703 = vmul.f32 %v695, %v695
        %v704 = vmul.f32 %v696, %v696
        %v705 = vmul.f32 %v697, %v697
        %v706 = vadd.f32 %v698, %v699
        %707 = vadd.xlane.f32.xlu0 %v706
        %v708 = vpop.xlane.xlu0 %707
        %v709 = vadd.f32 %v700, %v701
        %710 = vadd.xlane.f32.xlu0 %v709
        %v711 = vpop.xlane.xlu0 %710
        %v712 = vadd.f32 %v702, %v703
        %713 = vadd.xlane.f32.xlu0 %v712
        %v714 = vpop.xlane.xlu0 %713
        %v715 = vadd.f32 %v704, %v705
        %716 = vadd.xlane.f32.xlu0 %v715
        %v717 = vpop.xlane.xlu0 %716
        %v718 = vmul.f32 %v708, %v685
        %v719 = vmul.f32 %v711, %v685
        %v720 = vmul.f32 %v714, %v685
        %v721 = vmul.f32 %v717, %v685
        %v722 = vadd.f32 %v718, 1e-05
        %v723 = vadd.f32 %v719, 1e-05
        %v724 = vadd.f32 %v720, 1e-05
        %v725 = vadd.f32 %v721, 1e-05
        %v726 = vrsqrt.pop %v722
        %v727 = vrsqrt.pop %v723
        %v728 = vrsqrt.pop %v724
        %v729 = vrsqrt.pop %v725
        %v730 = vmul.f32 %v690, %v726
        %v731 = vmul.f32 %v691, %v726
        %v732 = vmul.f32 %v692, %v727
        %v733 = vmul.f32 %v693, %v727
        %v734 = vmul.f32 %v694, %v728
        %v735 = vmul.f32 %v695, %v728
        %v736 = vmul.f32 %v696, %v729
        %v737 = vmul.f32 %v697, %v729
        %v739 = vlaneseq
        %v740 = vshrl.u32 %v739, 7
        %v741 = vsub.s32 0, %v740
        %v742 = vrot.slane %v671, %v741
        %v743 = vlaneseq
        %v744 = vshrl.u32 %v743, 7
        %v745 = vsub.s32 1, %v744
        %v746 = vrot.slane %v671, %v745
        %v749 = vmul.f32 %v730, %v742
        %v750 = vmul.f32 %v731, %v746
        %v751 = vmul.f32 %v732, %v742
        %v752 = vmul.f32 %v733, %v746
        %v753 = vmul.f32 %v734, %v742
        %v754 = vmul.f32 %v735, %v746
        %v755 = vmul.f32 %v736, %v742
        %v756 = vmul.f32 %v737, %v746
        %v758 = vlaneseq
        %v759 = vshrl.u32 %v758, 7
        %v760 = vsub.s32 0, %v759
        %v761 = vrot.slane %v672, %v760
        %v762 = vlaneseq
        %v763 = vshrl.u32 %v762, 7
        %v764 = vsub.s32 1, %v763
        %v765 = vrot.slane %v672, %v764
        %v768 = vadd.f32 %v749, %v761
        %v769 = vadd.f32 %v750, %v765
        %v770 = vadd.f32 %v751, %v761
        %v771 = vadd.f32 %v752, %v765
        %v772 = vadd.f32 %v753, %v761
        %v773 = vadd.f32 %v754, %v765
        %v774 = vadd.f32 %v755, %v761
        %v775 = vadd.f32 %v756, %v765
        %v776 = vmax.f32 %v768, 0.0
        %v777 = vmax.f32 %v769, 0.0
        %v778 = vmax.f32 %v770, 0.0
        %v779 = vmax.f32 %v771, 0.0
        %v780 = vmax.f32 %v772, 0.0
        %v781 = vmax.f32 %v773, 0.0
        %v782 = vmax.f32 %v774, 0.0
        %v783 = vmax.f32 %v775, 0.0
        %v784 = vld [vmem:[#allocation2] sm:$0xff]
        %v785 = vld [vmem:[#allocation2 + $0x8] sm:$0xff]
        %v786 = vld [vmem:[#allocation2 + $0x10] sm:$0xff]
        %v787 = vld [vmem:[#allocation2 + $0x18] sm:$0xff]
        %v788 = vld [vmem:[#allocation2 + $0x20] sm:$0xff]
        %v789 = vld [vmem:[#allocation2 + $0x28] sm:$0xff]
        %v790 = vld [vmem:[#allocation2 + $0x30] sm:$0xff]
        %v791 = vld [vmem:[#allocation2 + $0x38] sm:$0xff]
        %v792 = vld [vmem:[#allocation2 + $0x40] sm:$0xff]
        %v793 = vld [vmem:[#allocation2 + $0x48] sm:$0xff]
        %v794 = vld [vmem:[#allocation2 + $0x50] sm:$0xff]
        %v795 = vld [vmem:[#allocation2 + $0x58] sm:$0xff]
        %v796 = vld [vmem:[#allocation2 + $0x60] sm:$0xff]
        %v797 = vld [vmem:[#allocation2 + $0x68] sm:$0xff]
        %v798 = vld [vmem:[#allocation2 + $0x70] sm:$0xff]
        %v799 = vld [vmem:[#allocation2 + $0x78] sm:$0xff]
        %v800 = vld [vmem:[#allocation2 + $0x80] sm:$0xff]
        %v801 = vld [vmem:[#allocation2 + $0x88] sm:$0xff]
        %v802 = vld [vmem:[#allocation2 + $0x90] sm:$0xff]
        %v803 = vld [vmem:[#allocation2 + $0x98] sm:$0xff]
        %v804 = vld [vmem:[#allocation2 + $0xa0] sm:$0xff]
        %v805 = vld [vmem:[#allocation2 + $0xa8] sm:$0xff]
        %v806 = vld [vmem:[#allocation2 + $0xb0] sm:$0xff]
        %v807 = vld [vmem:[#allocation2 + $0xb8] sm:$0xff]
        %v808 = vld [vmem:[#allocation2 + $0xc0] sm:$0xff]
        %v809 = vld [vmem:[#allocation2 + $0xc8] sm:$0xff]
        %v810 = vld [vmem:[#allocation2 + $0xd0] sm:$0xff]
        %v811 = vld [vmem:[#allocation2 + $0xd8] sm:$0xff]
        %v812 = vld [vmem:[#allocation2 + $0xe0] sm:$0xff]
        %v813 = vld [vmem:[#allocation2 + $0xe8] sm:$0xff]
        %v814 = vld [vmem:[#allocation2 + $0xf0] sm:$0xff]
        %v815 = vld [vmem:[#allocation2 + $0xf8] sm:$0xff]
        %v816 = vld [vmem:[#allocation2 + $0x100] sm:$0xff]
        %v817 = vld [vmem:[#allocation2 + $0x108] sm:$0xff]
        %v818 = vld [vmem:[#allocation2 + $0x110] sm:$0xff]
        %v819 = vld [vmem:[#allocation2 + $0x118] sm:$0xff]
        %v820 = vld [vmem:[#allocation2 + $0x120] sm:$0xff]
        %v821 = vld [vmem:[#allocation2 + $0x128] sm:$0xff]
        %v822 = vld [vmem:[#allocation2 + $0x130] sm:$0xff]
        %v823 = vld [vmem:[#allocation2 + $0x138] sm:$0xff]
        %v824 = vld [vmem:[#allocation2 + $0x140] sm:$0xff]
        %v825 = vld [vmem:[#allocation2 + $0x148] sm:$0xff]
        %v826 = vld [vmem:[#allocation2 + $0x150] sm:$0xff]
        %v827 = vld [vmem:[#allocation2 + $0x158] sm:$0xff]
        %v828 = vld [vmem:[#allocation2 + $0x160] sm:$0xff]
        %v829 = vld [vmem:[#allocation2 + $0x168] sm:$0xff]
        %v830 = vld [vmem:[#allocation2 + $0x170] sm:$0xff]
        %v831 = vld [vmem:[#allocation2 + $0x178] sm:$0xff]
        %v832 = vld [vmem:[#allocation2 + $0x180] sm:$0xff]
        %v833 = vld [vmem:[#allocation2 + $0x188] sm:$0xff]
        %v834 = vld [vmem:[#allocation2 + $0x190] sm:$0xff]
        %v835 = vld [vmem:[#allocation2 + $0x198] sm:$0xff]
        %v836 = vld [vmem:[#allocation2 + $0x1a0] sm:$0xff]
        %v837 = vld [vmem:[#allocation2 + $0x1a8] sm:$0xff]
        %v838 = vld [vmem:[#allocation2 + $0x1b0] sm:$0xff]
        %v839 = vld [vmem:[#allocation2 + $0x1b8] sm:$0xff]
        %v840 = vld [vmem:[#allocation2 + $0x1c0] sm:$0xff]
        %v841 = vld [vmem:[#allocation2 + $0x1c8] sm:$0xff]
        %v842 = vld [vmem:[#allocation2 + $0x1d0] sm:$0xff]
        %v843 = vld [vmem:[#allocation2 + $0x1d8] sm:$0xff]
        %v844 = vld [vmem:[#allocation2 + $0x1e0] sm:$0xff]
        %v845 = vld [vmem:[#allocation2 + $0x1e8] sm:$0xff]
        %v846 = vld [vmem:[#allocation2 + $0x1f0] sm:$0xff]
        %v847 = vld [vmem:[#allocation2 + $0x1f8] sm:$0xff]
        %v848 = vld [vmem:[%s8] sm:$0x3]
        %v850 = vlaneseq
        %v851 = vshrl.u32 %v850, 7
        %v852 = vsub.s32 0, %v851
        %v853 = vrot.slane %v848, %v852
        %v854 = vlaneseq
        %v855 = vshrl.u32 %v854, 7
        %v856 = vsub.s32 1, %v855
        %v857 = vrot.slane %v848, %v856
        %860 = vmatprep.subr.mxu0 %v815
        %861 = vmatpush1.msra.mxu0 %v814
        %862 = vmatprep.subr.mxu0 %v813
        %863 = vmatpush1.msra.mxu0 %v812
        %864 = vmatprep.subr.mxu0 %v811
        %865 = vmatpush1.msra.mxu0 %v810
        %866 = vmatprep.subr.mxu0 %v809
        %867 = vmatpush1.msra.mxu0 %v808
        %868 = vmatprep.subr.mxu0 %v807
        %869 = vmatpush1.msra.mxu0 %v806
        %870 = vmatprep.subr.mxu0 %v805
        %871 = vmatpush1.msra.mxu0 %v804
        %872 = vmatprep.subr.mxu0 %v803
        %873 = vmatpush1.msra.mxu0 %v802
        %874 = vmatprep.subr.mxu0 %v801
        %875 = vmatpush1.msra.mxu0 %v800
        %876 = vmatprep.subr.mxu0 %v799
        %877 = vmatpush1.msra.mxu0 %v798
        %878 = vmatprep.subr.mxu0 %v797
        %879 = vmatpush1.msra.mxu0 %v796
        %880 = vmatprep.subr.mxu0 %v795
        %881 = vmatpush1.msra.mxu0 %v794
        %882 = vmatprep.subr.mxu0 %v793
        %883 = vmatpush1.msra.mxu0 %v792
        %884 = vmatprep.subr.mxu0 %v791
        %885 = vmatpush1.msra.mxu0 %v790
        %886 = vmatprep.subr.mxu0 %v789
        %887 = vmatpush1.msra.mxu0 %v788
        %888 = vmatprep.subr.mxu0 %v787
        %889 = vmatpush1.msra.mxu0 %v786
        %890 = vmatprep.subr.mxu0 %v785
        %891 = vmatpush1.msra.mxu0 %v784
        %892 = vmatprep.subr.mxu0 %v847
        %893 = vmatpush2.msra.mxu0 %v846
        %894 = vmatprep.subr.mxu0 %v845
        %895 = vmatpush2.msra.mxu0 %v844
        %896 = vmatprep.subr.mxu0 %v843
        %897 = vmatpush2.msra.mxu0 %v842
        %898 = vmatprep.subr.mxu0 %v841
        %899 = vmatpush2.msra.mxu0 %v840
        %900 = vmatprep.subr.mxu0 %v839
        %901 = vmatpush2.msra.mxu0 %v838
        %902 = vmatprep.subr.mxu0 %v837
        %903 = vmatpush2.msra.mxu0 %v836
        %904 = vmatprep.subr.mxu0 %v835
        %905 = vmatpush2.msra.mxu0 %v834
        %906 = vmatprep.subr.mxu0 %v833
        %907 = vmatpush2.msra.mxu0 %v832
        %908 = vmatprep.subr.mxu0 %v831
        %909 = vmatpush2.msra.mxu0 %v830
        %910 = vmatprep.subr.mxu0 %v829
        %911 = vmatpush2.msra.mxu0 %v828
        %912 = vmatprep.subr.mxu0 %v827
        %913 = vmatpush2.msra.mxu0 %v826
        %914 = vmatprep.subr.mxu0 %v825
        %915 = vmatpush2.msra.mxu0 %v824
        %916 = vmatprep.subr.mxu0 %v823
        %917 = vmatpush2.msra.mxu0 %v822
        %918 = vmatprep.subr.mxu0 %v821
        %919 = vmatpush2.msra.mxu0 %v820
        %920 = vmatprep.subr.mxu0 %v819
        %921 = vmatpush2.msra.mxu0 %v818
        %922 = vmatprep.subr.mxu0 %v817
        %923 = vmatpush2.msra.mxu0 %v816
        %924 = vmatprep.mubr.f32.mxu0 %v777
        %925 = vmatmul.mubr.f32.gmra.mxu0 %v776
        %v926 = vpop.f32.mrf.mxu0
        %v927 = vadd.f32 %v853, %v926
        %v928 = vpop.f32.mrf.mxu0
        %v929 = vadd.f32 %v857, %v928
        %930 = vmatprep.mubr.f32.mxu0 %v779
        %931 = vmatmul.mubr.f32.gmra.mxu0 %v778
        %v932 = vpop.f32.mrf.mxu0
        %v933 = vadd.f32 %v853, %v932
        %v934 = vpop.f32.mrf.mxu0
        %v935 = vadd.f32 %v857, %v934
        %936 = vmatprep.mubr.f32.mxu0 %v781
        %937 = vmatmul.mubr.f32.gmra.mxu0 %v780
        %v938 = vpop.f32.mrf.mxu0
        %v939 = vadd.f32 %v853, %v938
        %v940 = vpop.f32.mrf.mxu0
        %v941 = vadd.f32 %v857, %v940
        %942 = vmatprep.mubr.f32.mxu0 %v783
        %943 = vmatmul.mubr.f32.gmra.mxu0 %v782
        %v944 = vpop.f32.mrf.mxu0
        %v945 = vadd.f32 %v853, %v944
        %v946 = vpop.f32.mrf.mxu0
        %v947 = vadd.f32 %v857, %v946
        %948 = vdwg.mxu0
        %v949 = vld [vmem:[%s9] sm:$0x3]
        %v950 = vld [vmem:[%s10] sm:$0x3]
        %v951 = vadd.f32 %v927, %v929
        %952 = vadd.xlane.f32.xlu0 %v951
        %v953 = vpop.xlane.xlu0 %952
        %v954 = vadd.f32 %v933, %v935
        %955 = vadd.xlane.f32.xlu0 %v954
        %v956 = vpop.xlane.xlu0 %955
        %v957 = vadd.f32 %v939, %v941
        %958 = vadd.xlane.f32.xlu0 %v957
        %v959 = vpop.xlane.xlu0 %958
        %v960 = vadd.f32 %v945, %v947
        %961 = vadd.xlane.f32.xlu0 %v960
        %v962 = vpop.xlane.xlu0 %961
        %v963 = vmul.f32 %v953, %v685
        %v964 = vmul.f32 %v956, %v685
        %v965 = vmul.f32 %v959, %v685
        %v966 = vmul.f32 %v962, %v685
        %v967 = vsub.f32 %v927, %v963
        %v968 = vsub.f32 %v929, %v963
        %v969 = vsub.f32 %v933, %v964
        %v970 = vsub.f32 %v935, %v964
        %v971 = vsub.f32 %v939, %v965
        %v972 = vsub.f32 %v941, %v965
        %v973 = vsub.f32 %v945, %v966
        %v974 = vsub.f32 %v947, %v966
        %v975 = vmul.f32 %v967, %v967
        %v976 = vmul.f32 %v968, %v968
        %v977 = vmul.f32 %v969, %v969
        %v978 = vmul.f32 %v970, %v970
        %v979 = vmul.f32 %v971, %v971
        %v980 = vmul.f32 %v972, %v972
        %v981 = vmul.f32 %v973, %v973
        %v982 = vmul.f32 %v974, %v974
        %v983 = vadd.f32 %v975, %v976
        %984 = vadd.xlane.f32.xlu0 %v983
        %v985 = vpop.xlane.xlu0 %984
        %v986 = vadd.f32 %v977, %v978
        %987 = vadd.xlane.f32.xlu0 %v986
        %v988 = vpop.xlane.xlu0 %987
        %v989 = vadd.f32 %v979, %v980
        %990 = vadd.xlane.f32.xlu0 %v989
        %v991 = vpop.xlane.xlu0 %990
        %v992 = vadd.f32 %v981, %v982
        %993 = vadd.xlane.f32.xlu0 %v992
        %v994 = vpop.xlane.xlu0 %993
        %v995 = vmul.f32 %v985, %v685
        %v996 = vmul.f32 %v988, %v685
        %v997 = vmul.f32 %v991, %v685
        %v998 = vmul.f32 %v994, %v685
        %v999 = vadd.f32 %v995, 1e-05
        %v1000 = vadd.f32 %v996, 1e-05
        %v1001 = vadd.f32 %v997, 1e-05
        %v1002 = vadd.f32 %v998, 1e-05
        %v1003 = vrsqrt.pop %v999
        %v1004 = vrsqrt.pop %v1000
        %v1005 = vrsqrt.pop %v1001
        %v1006 = vrsqrt.pop %v1002
        %v1007 = vmul.f32 %v967, %v1003
        %v1008 = vmul.f32 %v968, %v1003
        %v1009 = vmul.f32 %v969, %v1004
        %v1010 = vmul.f32 %v970, %v1004
        %v1011 = vmul.f32 %v971, %v1005
        %v1012 = vmul.f32 %v972, %v1005
        %v1013 = vmul.f32 %v973, %v1006
        %v1014 = vmul.f32 %v974, %v1006
        %v1016 = vlaneseq
        %v1017 = vshrl.u32 %v1016, 7
        %v1018 = vsub.s32 0, %v1017
        %v1019 = vrot.slane %v949, %v1018
        %v1020 = vlaneseq
        %v1021 = vshrl.u32 %v1020, 7
        %v1022 = vsub.s32 1, %v1021
        %v1023 = vrot.slane %v949, %v1022
        %v1026 = vmul.f32 %v1007, %v1019
        %v1027 = vmul.f32 %v1008, %v1023
        %v1028 = vmul.f32 %v1009, %v1019
        %v1029 = vmul.f32 %v1010, %v1023
        %v1030 = vmul.f32 %v1011, %v1019
        %v1031 = vmul.f32 %v1012, %v1023
        %v1032 = vmul.f32 %v1013, %v1019
        %v1033 = vmul.f32 %v1014, %v1023
        %v1035 = vlaneseq
        %v1036 = vshrl.u32 %v1035, 7
        %v1037 = vsub.s32 0, %v1036
        %v1038 = vrot.slane %v950, %v1037
        %v1039 = vlaneseq
        %v1040 = vshrl.u32 %v1039, 7
        %v1041 = vsub.s32 1, %v1040
        %v1042 = vrot.slane %v950, %v1041
        %v1045 = vadd.f32 %v1026, %v1038
        %v1046 = vadd.f32 %v1027, %v1042
        %v1047 = vadd.f32 %v1028, %v1038
        %v1048 = vadd.f32 %v1029, %v1042
        %v1049 = vadd.f32 %v1030, %v1038
        %v1050 = vadd.f32 %v1031, %v1042
        %v1051 = vadd.f32 %v1032, %v1038
        %v1052 = vadd.f32 %v1033, %v1042
        %v1053 = vmax.f32 %v1045, 0.0
        %v1054 = vmax.f32 %v1046, 0.0
        %v1055 = vmax.f32 %v1047, 0.0
        %v1056 = vmax.f32 %v1048, 0.0
        %v1057 = vmax.f32 %v1049, 0.0
        %v1058 = vmax.f32 %v1050, 0.0
        %v1059 = vmax.f32 %v1051, 0.0
        %v1060 = vmax.f32 %v1052, 0.0
        %v1061 = vld [vmem:[#allocation5] sm:$0xff]
        %v1062 = vld [vmem:[#allocation5 + $0x8] sm:$0xff]
        %v1063 = vld [vmem:[#allocation5 + $0x10] sm:$0xff]
        %v1064 = vld [vmem:[#allocation5 + $0x18] sm:$0xff]
        %v1065 = vld [vmem:[#allocation5 + $0x20] sm:$0xff]
        %v1066 = vld [vmem:[#allocation5 + $0x28] sm:$0xff]
        %v1067 = vld [vmem:[#allocation5 + $0x30] sm:$0xff]
        %v1068 = vld [vmem:[#allocation5 + $0x38] sm:$0xff]
        %v1069 = vld [vmem:[#allocation5 + $0x40] sm:$0xff]
        %v1070 = vld [vmem:[#allocation5 + $0x48] sm:$0xff]
        %v1071 = vld [vmem:[#allocation5 + $0x50] sm:$0xff]
        %v1072 = vld [vmem:[#allocation5 + $0x58] sm:$0xff]
        %v1073 = vld [vmem:[#allocation5 + $0x60] sm:$0xff]
        %v1074 = vld [vmem:[#allocation5 + $0x68] sm:$0xff]
        %v1075 = vld [vmem:[#allocation5 + $0x70] sm:$0xff]
        %v1076 = vld [vmem:[#allocation5 + $0x78] sm:$0xff]
        %v1077 = vld [vmem:[#allocation5 + $0x80] sm:$0xff]
        %v1078 = vld [vmem:[#allocation5 + $0x88] sm:$0xff]
        %v1079 = vld [vmem:[#allocation5 + $0x90] sm:$0xff]
        %v1080 = vld [vmem:[#allocation5 + $0x98] sm:$0xff]
        %v1081 = vld [vmem:[#allocation5 + $0xa0] sm:$0xff]
        %v1082 = vld [vmem:[#allocation5 + $0xa8] sm:$0xff]
        %v1083 = vld [vmem:[#allocation5 + $0xb0] sm:$0xff]
        %v1084 = vld [vmem:[#allocation5 + $0xb8] sm:$0xff]
        %v1085 = vld [vmem:[#allocation5 + $0xc0] sm:$0xff]
        %v1086 = vld [vmem:[#allocation5 + $0xc8] sm:$0xff]
        %v1087 = vld [vmem:[#allocation5 + $0xd0] sm:$0xff]
        %v1088 = vld [vmem:[#allocation5 + $0xd8] sm:$0xff]
        %v1089 = vld [vmem:[#allocation5 + $0xe0] sm:$0xff]
        %v1090 = vld [vmem:[#allocation5 + $0xe8] sm:$0xff]
        %v1091 = vld [vmem:[#allocation5 + $0xf0] sm:$0xff]
        %v1092 = vld [vmem:[#allocation5 + $0xf8] sm:$0xff]
        %v1093 = vld [vmem:[%s12] sm:$0x1]
        %v1095 = vlaneseq
        %v1096 = vshrl.u32 %v1095, 7
        %v1097 = vsub.s32 0, %v1096
        %v1098 = vrot.slane %v1093, %v1097
        %1100 = vmatprep.subr.mxu0 0.0
        %1101 = vmatpush1.msra.mxu0 %v1076
        %1102 = vmatprep.subr.mxu0 0.0
        %1103 = vmatpush1.msra.mxu0 %v1075
        %1104 = vmatprep.subr.mxu0 0.0
        %1105 = vmatpush1.msra.mxu0 %v1074
        %1106 = vmatprep.subr.mxu0 0.0
        %1107 = vmatpush1.msra.mxu0 %v1073
        %1108 = vmatprep.subr.mxu0 0.0
        %1109 = vmatpush1.msra.mxu0 %v1072
        %1110 = vmatprep.subr.mxu0 0.0
        %1111 = vmatpush1.msra.mxu0 %v1071
        %1112 = vmatprep.subr.mxu0 0.0
        %1113 = vmatpush1.msra.mxu0 %v1070
        %1114 = vmatprep.subr.mxu0 0.0
        %1115 = vmatpush1.msra.mxu0 %v1069
        %1116 = vmatprep.subr.mxu0 0.0
        %1117 = vmatpush1.msra.mxu0 %v1068
        %1118 = vmatprep.subr.mxu0 0.0
        %1119 = vmatpush1.msra.mxu0 %v1067
        %1120 = vmatprep.subr.mxu0 0.0
        %1121 = vmatpush1.msra.mxu0 %v1066
        %1122 = vmatprep.subr.mxu0 0.0
        %1123 = vmatpush1.msra.mxu0 %v1065
        %1124 = vmatprep.subr.mxu0 0.0
        %1125 = vmatpush1.msra.mxu0 %v1064
        %1126 = vmatprep.subr.mxu0 0.0
        %1127 = vmatpush1.msra.mxu0 %v1063
        %1128 = vmatprep.subr.mxu0 0.0
        %1129 = vmatpush1.msra.mxu0 %v1062
        %1130 = vmatprep.subr.mxu0 0.0
        %1131 = vmatpush1.msra.mxu0 %v1061
        %1132 = vmatprep.subr.mxu0 0.0
        %1133 = vmatpush2.msra.mxu0 %v1092
        %1134 = vmatprep.subr.mxu0 0.0
        %1135 = vmatpush2.msra.mxu0 %v1091
        %1136 = vmatprep.subr.mxu0 0.0
        %1137 = vmatpush2.msra.mxu0 %v1090
        %1138 = vmatprep.subr.mxu0 0.0
        %1139 = vmatpush2.msra.mxu0 %v1089
        %1140 = vmatprep.subr.mxu0 0.0
        %1141 = vmatpush2.msra.mxu0 %v1088
        %1142 = vmatprep.subr.mxu0 0.0
        %1143 = vmatpush2.msra.mxu0 %v1087
        %1144 = vmatprep.subr.mxu0 0.0
        %1145 = vmatpush2.msra.mxu0 %v1086
        %1146 = vmatprep.subr.mxu0 0.0
        %1147 = vmatpush2.msra.mxu0 %v1085
        %1148 = vmatprep.subr.mxu0 0.0
        %1149 = vmatpush2.msra.mxu0 %v1084
        %1150 = vmatprep.subr.mxu0 0.0
        %1151 = vmatpush2.msra.mxu0 %v1083
        %1152 = vmatprep.subr.mxu0 0.0
        %1153 = vmatpush2.msra.mxu0 %v1082
        %1154 = vmatprep.subr.mxu0 0.0
        %1155 = vmatpush2.msra.mxu0 %v1081
        %1156 = vmatprep.subr.mxu0 0.0
        %1157 = vmatpush2.msra.mxu0 %v1080
        %1158 = vmatprep.subr.mxu0 0.0
        %1159 = vmatpush2.msra.mxu0 %v1079
        %1160 = vmatprep.subr.mxu0 0.0
        %1161 = vmatpush2.msra.mxu0 %v1078
        %1162 = vmatprep.subr.mxu0 0.0
        %1163 = vmatpush2.msra.mxu0 %v1077
        %1164 = vmatprep.mubr.f32.mxu0 %v1054
        %1165 = vmatmul.mubr.f32.gmra.mxu0 %v1053
        %v1166 = vpop.f32.mrf.mxu0
        %v1167 = vadd.f32 %v1098, %v1166
        %v1168 = vpop.f32.mrf.mxu0
        %1169 = vmatprep.mubr.f32.mxu0 %v1056
        %1170 = vmatmul.mubr.f32.gmra.mxu0 %v1055
        %v1171 = vpop.f32.mrf.mxu0
        %v1172 = vadd.f32 %v1098, %v1171
        %v1173 = vpop.f32.mrf.mxu0
        %1174 = vmatprep.mubr.f32.mxu0 %v1058
        %1175 = vmatmul.mubr.f32.gmra.mxu0 %v1057
        %v1176 = vpop.f32.mrf.mxu0
        %v1177 = vadd.f32 %v1098, %v1176
        %v1178 = vpop.f32.mrf.mxu0
        %1179 = vmatprep.mubr.f32.mxu0 %v1060
        %1180 = vmatmul.mubr.f32.gmra.mxu0 %v1059
        %v1181 = vpop.f32.mrf.mxu0
        %v1182 = vadd.f32 %v1098, %v1181
        %v1183 = vpop.f32.mrf.mxu0
        %1184 = vdwg.mxu0
        %1185 = vst [vmem:[%s464] sm:$0xff] %v1167
        %1186 = vst [vmem:[%s464 + $0x8] sm:$0xff] %v1172
        %1187 = vst [vmem:[%s464 + $0x10] sm:$0xff] %v1177
        %1188 = vst [vmem:[%s464 + $0x18] sm:$0xff] %v1182
        %s1189 = sand.u32 %s315, 1
        %s1190 = scalar_lea.sflag [#allocation4], %s1189
        %s1191 = sand.u32 %s315, 1
        %s1192 = smul.addr %s1191, 32
        %s1193 = scalar_lea.vmem [#allocation7], %s1192
        // Predicated region
        $region81: #{tpu_custom_call.1} parent=71 // pred_check
          %p1194 = pneg %p325
        $region82: #{tpu_custom_call.1} parent=71 // pred_check_branch
          %1196 = sbr.rel (%p1194) target = $region84
        $region83: #{tpu_custom_call.1} parent=71 // pred_region
          %s1197 = smul.u32 4, %s29
          %s1199 = ssub.s32 512, 512
          %1200 = vsyncadd %s1190, %s1199
          %s1201 = smul.addr %s1197, 128
          %s1202 = scalar_lea.hbm %s13, %s1201
          %s1203 = sshll.u32 %s1193, 4
          %s1204 = int_to_ptr.vmem [resolvable:$true] %s1203
          %1209 = dma.vmem_to_hbm [thread:$0]  %s1204, 512, %s1202, %s1190, 128, 128, 8
        $region84: #{tpu_custom_call.1} parent=71 // pred_fallthru
          _
      $region72: #{tpu_custom_call.1} parent=5 // pred_fallthru
        _
      %p1210 = scmp.le.s32.totalorder 2, %s24
      // Predicated region
      $region85: #{tpu_custom_call.1} parent=5 // pred_check
        %p1211 = pneg %p1210
      $region86: #{tpu_custom_call.1} parent=5 // pred_check_branch
        %1213 = sbr.rel (%p1211) target = $region88
      $region87: #{tpu_custom_call.1} parent=5 // pred_region
        %s1214 = ssub.s32 %s24, 2
        // Predicated region
        $region89: #{tpu_custom_call.1} parent=87 // pred_check
          %p1215 = pneg %p331
        $region90: #{tpu_custom_call.1} parent=87 // pred_check_branch
          %1217 = sbr.rel (%p1215) target = $region92
        $region91: #{tpu_custom_call.1} parent=87 // pred_region
          %s1218 = sand.u32 %s316, 1
          %s1219 = scalar_lea.sflag [#allocation4], %s1218
          %s1220 = sand.u32 %s316, 1
          %s1221 = smul.addr %s1220, 32
          %s1222 = scalar_lea.vmem [#allocation7], %s1221
          %1223 = dma.done %s1219, 512
        $region92: #{tpu_custom_call.1} parent=87 // pred_fallthru
          _
      $region88: #{tpu_custom_call.1} parent=5 // pred_fallthru
        _
    $region6: #{tpu_custom_call.1} parent=1 // loop_footer
      %s28 = sadd.s32 1, %s24
    $region7: #{tpu_custom_call.1} parent=1 // loop_footer_branch
      %23 = sbr.rel target = $region3
    $region8: #{tpu_custom_call.1} parent=1 // loop_exit
      _
    %1224 = vsyncpa [#allocation3], 1
    %s1225 = scalar_lea.sflag [#allocation3], 1
    %1226 = vsyncpa %s1225, 1
    %1227 = vsyncpa [#allocation6], 1
    %1228 = vsyncpa [#allocation4], 1
    %s1229 = scalar_lea.sflag [#allocation4], 1
    %1230 = vsyncpa %s1229, 1

</llo_original>
